<compile_context>
chip_gen: v7x
topology: tpu7x:2x2x1
jax: 0.10.0
libtpu: 0.0.40
codegen_flags: <defaults>
</compile_context>

<pallas_src>
import functools
import math

import jax
import jax.numpy as jnp
from jax import lax
from jax.experimental import pallas as pl
from jax.experimental.pallas import tpu as pltpu


def _round_up(x, m):
    return (x + m - 1) // m * m


# --------------------------------------------------------------------------
# with_conv=True : pad (0,1,0,1) + Conv2d(C, C, k=3, s=2, p=0)
# --------------------------------------------------------------------------
def _downsample_conv_kernel(a_ref, w_ref, b_ref, o_ref, *, lt, wo1):
    # a_ref : (1, 4, 1, Ltb, C)  parity-plane row tile (+ halo); flat = i*wo1+j
    # w_ref : (9, C, C)          per-tap weight as (Cin, Cout), tap = kh*3+kw
    # b_ref : (1, C)
    # o_ref : (1, Lt, C)         Lt = tr*wo1 (column wo1-1 is junk, dropped
    #                            by the wrapper)
    acc = jnp.zeros((lt, o_ref.shape[2]), jnp.float32)
    for kh in range(3):
        for kw in range(3):
            plane = (kh % 2) * 2 + (kw % 2)          # row/col parity plane
            off = (kh // 2) * wo1 + (kw // 2)        # static flat offset
            patch = a_ref[0, plane, 0, pl.ds(off, lt), :]      # (Lt, Cin)
            acc = acc + jnp.dot(patch, w_ref[kh * 3 + kw],
                                preferred_element_type=jnp.float32)
    o_ref[0] = (acc + b_ref[...].astype(jnp.float32)).astype(o_ref.dtype)


def _downsample_conv(x_nchw, w, b, row_block=None):
    B, C, H, W = x_nchw.shape
    ho = (H - 2) // 2 + 1          # matches PyTorch: pad 1 bottom/right, k3 s2
    wo = (W - 2) // 2 + 1
    wo1 = wo + 1

    # rows-per-tile tr: Lt = tr*wo1 must be a multiple of 8 (sublane-aligned
    # output blocks) and the one-parity-row halo (wo1+1 elems) must fit in one
    # tile's worth of data (so the wrapper halo-concat trick works).
    step = 8 // math.gcd(wo1, 8)
    if row_block is None:
        target = max(512, 262144 // max(C, 1))       # ~flattened rows per tile
        tr = max(1, target // wo1)
    else:
        tr = max(1, int(row_block))
    tr = min(tr, ho)
    tr = max(step, _round_up(tr, step))
    while _round_up(tr * wo1 + wo1 + 1, 8) > 2 * tr * wo1:
        tr += step
    n_rt = -(-ho // tr)
    ho_pad = n_rt * tr
    lt = tr * wo1
    ltb = _round_up(lt + wo1 + 1, 8)                 # tile + halo length

    # NCHW -> NHWC, zero pad (covers the PyTorch zero pad row/col).
    x = jnp.transpose(x_nchw, (0, 2, 3, 1))                       # (B, H, W, C)
    hp, wp = 2 * (ho_pad + 1), 2 * wo1
    x = jnp.pad(x, ((0, 0), (0, hp - H), (0, wp - W), (0, 0)))

    # parity planes: planes[b, r*2+s, i*wo1+j, c] = x_pad[b, 2i+r, 2j+s, c]
    planes = x.reshape(B, ho_pad + 1, 2, wo1, 2, C)
    planes = jnp.transpose(planes, (0, 2, 4, 1, 3, 5))
    planes = planes.reshape(B, 4, (ho_pad + 1) * wo1, C)
    lflat_pad = (n_rt + 1) * lt
    planes = jnp.pad(
        planes, ((0, 0), (0, 0), (0, lflat_pad - (ho_pad + 1) * wo1), (0, 0)))

    # per-row-tile blocks with a (wo1 + 1)-element halo baked in
    main = planes[:, :, :n_rt * lt, :].reshape(B, 4, n_rt, lt, C)
    halo = planes[:, :, lt:(n_rt + 1) * lt, :].reshape(B, 4, n_rt, lt, C)
    halo = halo[:, :, :, :ltb - lt, :]
    a = jnp.concatenate([main, halo], axis=3)        # (B, 4, n_rt, Ltb, C)

    # Conv2d weight (Cout, Cin, 3, 3) -> per-tap (Cin, Cout)
    w_t = jnp.transpose(w, (2, 3, 1, 0)).reshape(9, C, C)
    b_row = b.reshape(1, C)

    kernel = functools.partial(_downsample_conv_kernel, lt=lt, wo1=wo1)
    out = pl.pallas_call(
        kernel,
        out_shape=jax.ShapeDtypeStruct((B, n_rt * lt, C), x_nchw.dtype),
        grid_spec=pltpu.PrefetchScalarGridSpec(
            num_scalar_prefetch=0,
            grid=(B, n_rt),
            in_specs=[
                pl.BlockSpec((1, 4, 1, ltb, C), lambda bi, rt: (bi, 0, rt, 0, 0)),
                pl.BlockSpec((9, C, C), lambda bi, rt: (0, 0, 0)),
                pl.BlockSpec((1, C), lambda bi, rt: (0, 0)),
            ],
            out_specs=pl.BlockSpec((1, lt, C), lambda bi, rt: (bi, rt, 0)),
        ),
        compiler_params=pltpu.CompilerParams(
            dimension_semantics=("parallel", "parallel"),
            vmem_limit_bytes=32 * 1024 * 1024),
    )(a, w_t, b_row)

    out = out.reshape(B, ho_pad, wo1, C)[:, :ho, :wo, :]   # drop junk col/rows
    return jnp.transpose(out, (0, 3, 1, 2))                # back to NCHW


# --------------------------------------------------------------------------
# with_conv=False : avg_pool2d(kernel_size=2, stride=2)
# --------------------------------------------------------------------------
def _downsample_pool_kernel(x_ref, o_ref):
    # x_ref: (1, 4, T, C) parity planes; o_ref: (1, T, C)
    s = (x_ref[0, 0].astype(jnp.float32) + x_ref[0, 1].astype(jnp.float32)
         + x_ref[0, 2].astype(jnp.float32) + x_ref[0, 3].astype(jnp.float32))
    o_ref[0] = (s * 0.25).astype(o_ref.dtype)


def _downsample_pool(x_nchw):
    B, C, H, W = x_nchw.shape
    ho, wo = H // 2, W // 2
    n = ho * wo
    x = jnp.transpose(x_nchw, (0, 2, 3, 1))[:, :2 * ho, :2 * wo, :]
    x = x.reshape(B, ho, 2, wo, 2, C)
    x = jnp.transpose(x, (0, 2, 4, 1, 3, 5)).reshape(B, 4, n, C)

    ts = min(n, _round_up(max(512, 262144 // max(C, 1)), 8))   # spatial tile
    if ts >= n:
        ts, npad = n, n
    else:
        npad = _round_up(n, ts)
    x = jnp.pad(x, ((0, 0), (0, 0), (0, npad - n), (0, 0)))

    out = pl.pallas_call(
        _downsample_pool_kernel,
        out_shape=jax.ShapeDtypeStruct((B, npad, C), x_nchw.dtype),
        grid_spec=pltpu.PrefetchScalarGridSpec(
            num_scalar_prefetch=0,
            grid=(B, npad // ts),
            in_specs=[pl.BlockSpec((1, 4, ts, C), lambda bi, i: (bi, 0, i, 0))],
            out_specs=pl.BlockSpec((1, ts, C), lambda bi, i: (bi, i, 0)),
        ),
        compiler_params=pltpu.CompilerParams(
            dimension_semantics=("parallel", "parallel"),
            vmem_limit_bytes=32 * 1024 * 1024),
    )(x)

    out = out[:, :n, :].reshape(B, ho, wo, C)
    return jnp.transpose(out, (0, 3, 1, 2))


def downsample_pallas(x_nchw, with_conv, w=None, b=None, row_block=None):
    """Forward of Downsample(in_channels, with_conv). x_nchw: (B, C, H, W)."""
    if with_conv:
        return _downsample_conv(x_nchw, w, b, row_block=row_block)
    return _downsample_pool(x_nchw)


# --------------------------------------------------------------------------
# Pure-JAX reference matching the PyTorch forward
# --------------------------------------------------------------------------
def downsample_reference(x_nchw, with_conv, w=None, b=None):
    if with_conv:
        xp = jnp.pad(x_nchw, ((0, 0), (0, 0), (0, 1), (0, 1)))
        out = lax.conv_general_dilated(
            xp, w, window_strides=(2, 2), padding="VALID",
            dimension_numbers=("NCHW", "OIHW", "NCHW"),
            precision=lax.Precision.HIGHEST)
        return out + b[None, :, None, None]
    s = lax.reduce_window(x_nchw, 0.0, lax.add,
                          window_dimensions=(1, 1, 2, 2),
                          window_strides=(1, 1, 2, 2), padding="VALID")
    return s * 0.25


if __name__ == "__main__":
    key = jax.random.PRNGKey(0)
    kx1, kx2, kx3, kw, kb = jax.random.split(key, 5)

    # --- with_conv=True : lane-aligned C=128, 16x16 spatial, batch 2 ---
    B, C, H, W = 2, 128, 16, 16
    x1 = jax.random.normal(kx1, (B, C, H, W), jnp.float32)
    w = 0.05 * jax.random.normal(kw, (C, C, 3, 3), jnp.float32)
    b = 0.02 * jax.random.normal(kb, (C,), jnp.float32)
    out1 = jax.block_until_ready(downsample_pallas(x1, True, w, b))
    ref1 = jax.block_until_ready(downsample_reference(x1, True, w, b))
    assert out1.shape == (B, C, H // 2, W // 2) and out1.dtype == x1.dtype
    assert jnp.allclose(out1, ref1, rtol=1e-4, atol=1e-4), (
        float(jnp.max(jnp.abs(out1 - ref1))))

    # --- with_conv=True : odd spatial + forced multi-row-tile path ---
    B3, C3, H3, W3 = 1, 128, 33, 31
    x3 = jax.random.normal(kx3, (B3, C3, H3, W3), jnp.float32)
    out3 = jax.block_until_ready(downsample_pallas(x3, True, w, b, row_block=4))
    ref3 = jax.block_until_ready(downsample_reference(x3, True, w, b))
    assert out3.shape == ref3.shape and out3.dtype == x3.dtype
    assert jnp.allclose(out3, ref3, rtol=1e-4, atol=1e-4), (
        float(jnp.max(jnp.abs(out3 - ref3))))

    # --- with_conv=False : avg_pool2d(2, 2) path, non-lane-aligned C ---
    B2, C2, H2, W2 = 2, 64, 16, 16
    x2 = jax.random.normal(kx2, (B2, C2, H2, W2), jnp.float32)
    out2 = jax.block_until_ready(downsample_pallas(x2, False))
    ref2 = jax.block_until_ready(downsample_reference(x2, False))
    assert out2.shape == (B2, C2, H2 // 2, W2 // 2) and out2.dtype == x2.dtype
    assert jnp.allclose(out2, ref2, rtol=1e-5, atol=1e-5), (
        float(jnp.max(jnp.abs(out2 - ref2))))

    print("KERNEL_OK")
</pallas_src>

<mosaic_0001>
module attributes {stable_mosaic.version = 11 : i64} {
  func.func @_downsample_conv_kernel(%arg0: i32, %arg1: i32, %arg2: memref<1x4x1x88x128xf32, #tpu.memory_space<vmem>>, %arg3: memref<9x128x128xf32, #tpu.memory_space<vmem>>, %arg4: memref<1x128xf32, #tpu.memory_space<vmem>>, %arg5: memref<1x72x128xf32, #tpu.memory_space<vmem>>) attributes {dimension_semantics = [#tpu.dimension_semantics<parallel>, #tpu.dimension_semantics<parallel>], iteration_bounds = array<i64: 2, 1>, scalar_prefetch = 0 : i64, scratch_operands = 0 : i64, tpu.core_type = #tpu.core_type<tc>, window_params = [{transform_indices = @transform_0, window_bounds = array<i64: 1, 4, 1, 88, 128>}, {pipeline_mode = #tpu.pipeline_mode<synchronous>, transform_indices = @transform_1, window_bounds = array<i64: 9, 128, 128>}, {pipeline_mode = #tpu.pipeline_mode<synchronous>, transform_indices = @transform_2, window_bounds = array<i64: 1, 128>}, {transform_indices = @transform_3, window_bounds = array<i64: 1, 72, 128>}]} {
    %cst = arith.constant 0.000000e+00 : f32
    %0 = vector.broadcast %cst : f32 to vector<72x128xf32>
    %c0 = arith.constant 0 : index
    %c0_0 = arith.constant 0 : index
    %c0_1 = arith.constant 0 : index
    %c0_2 = arith.constant 0 : index
    %c0_3 = arith.constant 0 : index
    %1 = vector.load %arg2[%c0, %c0_0, %c0_1, %c0_2, %c0_3] : memref<1x4x1x88x128xf32, #tpu.memory_space<vmem>>, vector<1x1x1x72x128xf32>
    %2 = vector.shape_cast %1 : vector<1x1x1x72x128xf32> to vector<72x128xf32>
    %c0_4 = arith.constant 0 : index
    %c0_5 = arith.constant 0 : index
    %c0_6 = arith.constant 0 : index
    %3 = vector.load %arg3[%c0_4, %c0_5, %c0_6] : memref<9x128x128xf32, #tpu.memory_space<vmem>>, vector<1x128x128xf32>
    %4 = vector.shape_cast %3 : vector<1x128x128xf32> to vector<128x128xf32>
    %cst_7 = arith.constant dense<0.000000e+00> : vector<72x128xf32>
    %5 = tpu.matmul %2, %4, %cst_7 {dimension_numbers = #tpu.dot_dimension_numbers<[1], [0], [0], [1], [0, 0, 1, 1], [], []>} : vector<72x128xf32>, vector<128x128xf32>, vector<72x128xf32> -> vector<72x128xf32>
    %6 = arith.addf %0, %5 : vector<72x128xf32>
    %c0_8 = arith.constant 0 : index
    %c1 = arith.constant 1 : index
    %c0_9 = arith.constant 0 : index
    %c0_10 = arith.constant 0 : index
    %c0_11 = arith.constant 0 : index
    %7 = vector.load %arg2[%c0_8, %c1, %c0_9, %c0_10, %c0_11] : memref<1x4x1x88x128xf32, #tpu.memory_space<vmem>>, vector<1x1x1x72x128xf32>
    %8 = vector.shape_cast %7 : vector<1x1x1x72x128xf32> to vector<72x128xf32>
    %c1_12 = arith.constant 1 : index
    %c0_13 = arith.constant 0 : index
    %c0_14 = arith.constant 0 : index
    %9 = vector.load %arg3[%c1_12, %c0_13, %c0_14] : memref<9x128x128xf32, #tpu.memory_space<vmem>>, vector<1x128x128xf32>
    %10 = vector.shape_cast %9 : vector<1x128x128xf32> to vector<128x128xf32>
    %cst_15 = arith.constant dense<0.000000e+00> : vector<72x128xf32>
    %11 = tpu.matmul %8, %10, %cst_15 {dimension_numbers = #tpu.dot_dimension_numbers<[1], [0], [0], [1], [0, 0, 1, 1], [], []>} : vector<72x128xf32>, vector<128x128xf32>, vector<72x128xf32> -> vector<72x128xf32>
    %12 = arith.addf %6, %11 : vector<72x128xf32>
    %c0_16 = arith.constant 0 : index
    %c0_17 = arith.constant 0 : index
    %c0_18 = arith.constant 0 : index
    %c1_19 = arith.constant 1 : index
    %c0_20 = arith.constant 0 : index
    %13 = vector.load %arg2[%c0_16, %c0_17, %c0_18, %c1_19, %c0_20] : memref<1x4x1x88x128xf32, #tpu.memory_space<vmem>>, vector<1x1x1x72x128xf32>
    %14 = vector.shape_cast %13 : vector<1x1x1x72x128xf32> to vector<72x128xf32>
    %c2 = arith.constant 2 : index
    %c0_21 = arith.constant 0 : index
    %c0_22 = arith.constant 0 : index
    %15 = vector.load %arg3[%c2, %c0_21, %c0_22] : memref<9x128x128xf32, #tpu.memory_space<vmem>>, vector<1x128x128xf32>
    %16 = vector.shape_cast %15 : vector<1x128x128xf32> to vector<128x128xf32>
    %cst_23 = arith.constant dense<0.000000e+00> : vector<72x128xf32>
    %17 = tpu.matmul %14, %16, %cst_23 {dimension_numbers = #tpu.dot_dimension_numbers<[1], [0], [0], [1], [0, 0, 1, 1], [], []>} : vector<72x128xf32>, vector<128x128xf32>, vector<72x128xf32> -> vector<72x128xf32>
    %18 = arith.addf %12, %17 : vector<72x128xf32>
    %c0_24 = arith.constant 0 : index
    %c2_25 = arith.constant 2 : index
    %c0_26 = arith.constant 0 : index
    %c0_27 = arith.constant 0 : index
    %c0_28 = arith.constant 0 : index
    %19 = vector.load %arg2[%c0_24, %c2_25, %c0_26, %c0_27, %c0_28] : memref<1x4x1x88x128xf32, #tpu.memory_space<vmem>>, vector<1x1x1x72x128xf32>
    %20 = vector.shape_cast %19 : vector<1x1x1x72x128xf32> to vector<72x128xf32>
    %c3 = arith.constant 3 : index
    %c0_29 = arith.constant 0 : index
    %c0_30 = arith.constant 0 : index
    %21 = vector.load %arg3[%c3, %c0_29, %c0_30] : memref<9x128x128xf32, #tpu.memory_space<vmem>>, vector<1x128x128xf32>
    %22 = vector.shape_cast %21 : vector<1x128x128xf32> to vector<128x128xf32>
    %cst_31 = arith.constant dense<0.000000e+00> : vector<72x128xf32>
    %23 = tpu.matmul %20, %22, %cst_31 {dimension_numbers = #tpu.dot_dimension_numbers<[1], [0], [0], [1], [0, 0, 1, 1], [], []>} : vector<72x128xf32>, vector<128x128xf32>, vector<72x128xf32> -> vector<72x128xf32>
    %24 = arith.addf %18, %23 : vector<72x128xf32>
    %c0_32 = arith.constant 0 : index
    %c3_33 = arith.constant 3 : index
    %c0_34 = arith.constant 0 : index
    %c0_35 = arith.constant 0 : index
    %c0_36 = arith.constant 0 : index
    %25 = vector.load %arg2[%c0_32, %c3_33, %c0_34, %c0_35, %c0_36] : memref<1x4x1x88x128xf32, #tpu.memory_space<vmem>>, vector<1x1x1x72x128xf32>
    %26 = vector.shape_cast %25 : vector<1x1x1x72x128xf32> to vector<72x128xf32>
    %c4 = arith.constant 4 : index
    %c0_37 = arith.constant 0 : index
    %c0_38 = arith.constant 0 : index
    %27 = vector.load %arg3[%c4, %c0_37, %c0_38] : memref<9x128x128xf32, #tpu.memory_space<vmem>>, vector<1x128x128xf32>
    %28 = vector.shape_cast %27 : vector<1x128x128xf32> to vector<128x128xf32>
    %cst_39 = arith.constant dense<0.000000e+00> : vector<72x128xf32>
    %29 = tpu.matmul %26, %28, %cst_39 {dimension_numbers = #tpu.dot_dimension_numbers<[1], [0], [0], [1], [0, 0, 1, 1], [], []>} : vector<72x128xf32>, vector<128x128xf32>, vector<72x128xf32> -> vector<72x128xf32>
    %30 = arith.addf %24, %29 : vector<72x128xf32>
    %c0_40 = arith.constant 0 : index
    %c2_41 = arith.constant 2 : index
    %c0_42 = arith.constant 0 : index
    %c1_43 = arith.constant 1 : index
    %c0_44 = arith.constant 0 : index
    %31 = vector.load %arg2[%c0_40, %c2_41, %c0_42, %c1_43, %c0_44] : memref<1x4x1x88x128xf32, #tpu.memory_space<vmem>>, vector<1x1x1x72x128xf32>
    %32 = vector.shape_cast %31 : vector<1x1x1x72x128xf32> to vector<72x128xf32>
    %c5 = arith.constant 5 : index
    %c0_45 = arith.constant 0 : index
    %c0_46 = arith.constant 0 : index
    %33 = vector.load %arg3[%c5, %c0_45, %c0_46] : memref<9x128x128xf32, #tpu.memory_space<vmem>>, vector<1x128x128xf32>
    %34 = vector.shape_cast %33 : vector<1x128x128xf32> to vector<128x128xf32>
    %cst_47 = arith.constant dense<0.000000e+00> : vector<72x128xf32>
    %35 = tpu.matmul %32, %34, %cst_47 {dimension_numbers = #tpu.dot_dimension_numbers<[1], [0], [0], [1], [0, 0, 1, 1], [], []>} : vector<72x128xf32>, vector<128x128xf32>, vector<72x128xf32> -> vector<72x128xf32>
    %36 = arith.addf %30, %35 : vector<72x128xf32>
    %c0_48 = arith.constant 0 : index
    %c0_49 = arith.constant 0 : index
    %c0_50 = arith.constant 0 : index
    %c9 = arith.constant 9 : index
    %c0_51 = arith.constant 0 : index
    %37 = vector.load %arg2[%c0_48, %c0_49, %c0_50, %c9, %c0_51] : memref<1x4x1x88x128xf32, #tpu.memory_space<vmem>>, vector<1x1x1x72x128xf32>
    %38 = vector.shape_cast %37 : vector<1x1x1x72x128xf32> to vector<72x128xf32>
    %c6 = arith.constant 6 : index
    %c0_52 = arith.constant 0 : index
    %c0_53 = arith.constant 0 : index
    %39 = vector.load %arg3[%c6, %c0_52, %c0_53] : memref<9x128x128xf32, #tpu.memory_space<vmem>>, vector<1x128x128xf32>
    %40 = vector.shape_cast %39 : vector<1x128x128xf32> to vector<128x128xf32>
    %cst_54 = arith.constant dense<0.000000e+00> : vector<72x128xf32>
    %41 = tpu.matmul %38, %40, %cst_54 {dimension_numbers = #tpu.dot_dimension_numbers<[1], [0], [0], [1], [0, 0, 1, 1], [], []>} : vector<72x128xf32>, vector<128x128xf32>, vector<72x128xf32> -> vector<72x128xf32>
    %42 = arith.addf %36, %41 : vector<72x128xf32>
    %c0_55 = arith.constant 0 : index
    %c1_56 = arith.constant 1 : index
    %c0_57 = arith.constant 0 : index
    %c9_58 = arith.constant 9 : index
    %c0_59 = arith.constant 0 : index
    %43 = vector.load %arg2[%c0_55, %c1_56, %c0_57, %c9_58, %c0_59] : memref<1x4x1x88x128xf32, #tpu.memory_space<vmem>>, vector<1x1x1x72x128xf32>
    %44 = vector.shape_cast %43 : vector<1x1x1x72x128xf32> to vector<72x128xf32>
    %c7 = arith.constant 7 : index
    %c0_60 = arith.constant 0 : index
    %c0_61 = arith.constant 0 : index
    %45 = vector.load %arg3[%c7, %c0_60, %c0_61] : memref<9x128x128xf32, #tpu.memory_space<vmem>>, vector<1x128x128xf32>
    %46 = vector.shape_cast %45 : vector<1x128x128xf32> to vector<128x128xf32>
    %cst_62 = arith.constant dense<0.000000e+00> : vector<72x128xf32>
    %47 = tpu.matmul %44, %46, %cst_62 {dimension_numbers = #tpu.dot_dimension_numbers<[1], [0], [0], [1], [0, 0, 1, 1], [], []>} : vector<72x128xf32>, vector<128x128xf32>, vector<72x128xf32> -> vector<72x128xf32>
    %48 = arith.addf %42, %47 : vector<72x128xf32>
    %c0_63 = arith.constant 0 : index
    %c0_64 = arith.constant 0 : index
    %c0_65 = arith.constant 0 : index
    %c10 = arith.constant 10 : index
    %c0_66 = arith.constant 0 : index
    %49 = vector.load %arg2[%c0_63, %c0_64, %c0_65, %c10, %c0_66] : memref<1x4x1x88x128xf32, #tpu.memory_space<vmem>>, vector<1x1x1x72x128xf32>
    %50 = vector.shape_cast %49 : vector<1x1x1x72x128xf32> to vector<72x128xf32>
    %c8 = arith.constant 8 : index
    %c0_67 = arith.constant 0 : index
    %c0_68 = arith.constant 0 : index
    %51 = vector.load %arg3[%c8, %c0_67, %c0_68] : memref<9x128x128xf32, #tpu.memory_space<vmem>>, vector<1x128x128xf32>
    %52 = vector.shape_cast %51 : vector<1x128x128xf32> to vector<128x128xf32>
    %cst_69 = arith.constant dense<0.000000e+00> : vector<72x128xf32>
    %53 = tpu.matmul %50, %52, %cst_69 {dimension_numbers = #tpu.dot_dimension_numbers<[1], [0], [0], [1], [0, 0, 1, 1], [], []>} : vector<72x128xf32>, vector<128x128xf32>, vector<72x128xf32> -> vector<72x128xf32>
    %54 = arith.addf %48, %53 : vector<72x128xf32>
    %c0_70 = arith.constant 0 : index
    %c0_71 = arith.constant 0 : index
    %55 = vector.load %arg4[%c0_70, %c0_71] : memref<1x128xf32, #tpu.memory_space<vmem>>, vector<1x128xf32>
    %56 = vector.broadcast %55 : vector<1x128xf32> to vector<72x128xf32>
    %57 = arith.addf %54, %56 : vector<72x128xf32>
    %c0_72 = arith.constant 0 : index
    %c0_73 = arith.constant 0 : index
    %c0_74 = arith.constant 0 : index
    %58 = vector.load %arg5[%c0_72, %c0_73, %c0_74] : memref<1x72x128xf32, #tpu.memory_space<vmem>>, vector<1x72x128xf32>
    %59 = vector.shape_cast %58 : vector<1x72x128xf32> to vector<72x128xf32>
    %60 = vector.shape_cast %57 : vector<72x128xf32> to vector<1x72x128xf32>
    tpu.vector_store %arg5[%c0_72, %c0_73, %c0_74], %60 {strides = array<i32>} : memref<1x72x128xf32, #tpu.memory_space<vmem>>, vector<1x72x128xf32>,
    return
  }
  func.func @transform_0(%arg0: i32, %arg1: i32) -> (i32, i32, i32, i32, i32) {
    %c0_i32 = arith.constant 0 : i32
    %c0_i32_0 = arith.constant 0 : i32
    %c0_i32_1 = arith.constant 0 : i32
    %c0_i32_2 = arith.constant 0 : i32
    return %arg0, %c0_i32, %arg1, %c0_i32_0, %c0_i32_1 : i32, i32, i32, i32, i32
  }
  func.func @transform_1(%arg0: i32, %arg1: i32) -> (i32, i32, i32) {
    %c0_i32 = arith.constant 0 : i32
    %c0_i32_0 = arith.constant 0 : i32
    %c0_i32_1 = arith.constant 0 : i32
    %c0_i32_2 = arith.constant 0 : i32
    return %c0_i32, %c0_i32_0, %c0_i32_1 : i32, i32, i32
  }
  func.func @transform_2(%arg0: i32, %arg1: i32) -> (i32, i32) {
    %c0_i32 = arith.constant 0 : i32
    %c0_i32_0 = arith.constant 0 : i32
    %c0_i32_1 = arith.constant 0 : i32
    return %c0_i32, %c0_i32_0 : i32, i32
  }
  func.func @transform_3(%arg0: i32, %arg1: i32) -> (i32, i32, i32) {
    %c0_i32 = arith.constant 0 : i32
    %c0_i32_0 = arith.constant 0 : i32
    return %arg0, %arg1, %c0_i32 : i32, i32, i32
  }
}

</mosaic_0001>

<llo_original>
// kernel: tpu_custom_call.1
$region0: #{tpu_custom_call.1}
  #allocation0 [shape = 'u32[]', space=smem, size = 0x4, offset = 0x4, fixed_abs, tag = 'smem constant byte address 0x4 - core index']
  #allocation1 [shape = 'u32[144,128]{1,0:T(1,128)}', space=vmem, size = 0x12000, scoped, tag = 'internal scratch']
  %s0 = inlined_call_operand.hbm [shape: f32[2,4,1,88,128], index: 0, kind: input, shape index: {}]
  %s1 = inlined_call_operand.hbm [shape: f32[9,128,128], index: 1, kind: input, shape index: {}]
  %s2 = inlined_call_operand.vmem [shape: f32[1,128], index: 2, kind: input, shape index: {}]
  %s3 = inlined_call_operand.hbm [shape: f32[2,72,128], index: 3, kind: output, shape index: {}]
  %s4 = sld [smem:[#allocation0]]
  $region53: #{tpu_custom_call.1} parent=0
    _
  %s6 = ssub.s32 1, %s4
  %s7 = scalar_select 0, %s6, %s4
  $region1: #{tpu_custom_call.1} parent=0
    #allocation2 [shape = 'u8[360448]{0}', space=vmem, size = 0x58000, scoped, tag = 'input window, operand 0']
    #allocation3 [shape = 's32[2]{0}', space=sflag, size = 0x8, scoped, tag = 'scoped memory for tpu_custom_call.1']
    #allocation4 [shape = 's32[2]{0}', space=sflag, size = 0x8, scoped, tag = 'scoped memory for tpu_custom_call.1']
    #allocation5 [shape = 'u8[589824]{0}', space=vmem, size = 0x90000, scoped, tag = 'input window, operand 1, single buffered']
    #allocation6 [shape = 's32[1]{0}', space=sflag, size = 0x4, scoped, tag = 'scoped memory for tpu_custom_call.1']
    #allocation7 [shape = 'u8[73728]{0}', space=vmem, size = 0x12000, scoped, tag = 'output window, operand 0']
    %8 = vsyncpa [#allocation3], 0
    %s9 = scalar_lea.sflag [#allocation3], 1
    %10 = vsyncpa %s9, 0
    %11 = vsyncpa [#allocation6], 0
    %12 = vsyncpa [#allocation4], 0
    %s13 = scalar_lea.sflag [#allocation4], 1
    %14 = vsyncpa %s13, 0
    loop: start=0, step=1, limit=4
    $region2: #{tpu_custom_call.1} parent=1 // loop_pre_header
      _
    $region3: #{tpu_custom_call.1} parent=1 // loop_header
      %s16 = sphi 0, %s20
      %p17 = scmp.ge.s32.totalorder %s16, 4
      %s23 = sphi 0, %s35
      %s24 = sphi 0, %s31
      %s25 = sphi 0, %s23
      %s26 = sphi 0, %s24
      %s27 = sphi 0, %s25
      %s28 = sphi 0, %s26
      %s40 = sphi 0, %s42
      %s43 = sphi 0, %s40
      %s44 = sphi 0, %s43
      %s60 = sphi 0, %s44
      %s64 = sphi 0, %s64
      %s66 = sphi 0, %s64
      %s67 = sphi 0, %s66
      %s81 = sphi 0, %s67
      %s85 = sphi 0, %s85
      %s87 = sphi 0, %s85
      %s88 = sphi 0, %s87
      %s102 = sphi 0, %s88
      %s110 = sphi 0, %s112
      %s113 = sphi 0, %s110
      %s114 = sphi 0, %s113
      %s130 = sphi 0, %s114
    $region4: #{tpu_custom_call.1} parent=1 // loop_header_branch
      %19 = sbr.rel (%p17) target = $region8
    $region5: #{tpu_custom_call.1} parent=1 // loop_body
      %s21 = ssub.s32 %s16, 1
      %s22 = ssub.s32 %s16, 2
      %s29 = sadd.s32 1, %s24
      %p30 = scmp.ge.s32.totalorder %s29, 1
      %s31 = scalar_select %p30, 0, %s29
      %s32 = sadd.s32 1, %s23
      %s33 = scalar_select %p30, %s32, %s23
      %p34 = scmp.ge.s32.totalorder %s33, 2
      %s35 = scalar_select %p34, 0, %s33
      %s36 = ssub.s32 %s23, %s35
      %s37 = ssub.s32 %s24, %s31
      %s38 = sor.u32 %s36, %s37
      %p39 = scmp.eq.s32.totalorder %s38, 0
      %s41 = sadd.s32 %s40, 1
      %s42 = scalar_select %p39, %s40, %s41
      %p45 = pneg %p39
      %p46 = scmp.eq.s32.totalorder %s16, 1
      %p47 = por %p45, %p46
      %p48 = scmp.ne.s32.totalorder %s40, %s43
      %p49 = scmp.eq.s32.totalorder %s16, 0
      %p50 = por %p48, %p49
      %p51 = scmp.ne.s32.totalorder %s40, %s43
      %p52 = scmp.eq.s32.totalorder %s21, 1
      %p53 = por %p51, %p52
      %p54 = scmp.ne.s32.totalorder %s43, %s44
      %p55 = scmp.eq.s32.totalorder %s21, 0
      %p56 = por %p54, %p55
      %p57 = scmp.ne.s32.totalorder %s43, %s44
      %p58 = scmp.eq.s32.totalorder %s22, 1
      %p59 = por %p57, %p58
      %p61 = scmp.ne.s32.totalorder %s44, %s60
      %p62 = scmp.eq.s32.totalorder %s22, 0
      %p63 = por %p61, %p62
      %s65 = sadd.s32 %s64, 1
      %p68 = scmp.eq.s32.totalorder %s16, 1
      %p69 = scmp.ne.s32.totalorder %s64, %s66
      %p70 = scmp.eq.s32.totalorder %s16, 0
      %p71 = por %p69, %p70
      %p72 = scmp.ne.s32.totalorder %s64, %s66
      %p73 = scmp.eq.s32.totalorder %s21, 1
      %p74 = por %p72, %p73
      %p75 = scmp.ne.s32.totalorder %s66, %s67
      %p76 = scmp.eq.s32.totalorder %s21, 0
      %p77 = por %p75, %p76
      %p78 = scmp.ne.s32.totalorder %s66, %s67
      %p79 = scmp.eq.s32.totalorder %s22, 1
      %p80 = por %p78, %p79
      %p82 = scmp.ne.s32.totalorder %s67, %s81
      %p83 = scmp.eq.s32.totalorder %s22, 0
      %p84 = por %p82, %p83
      %s86 = sadd.s32 %s85, 1
      %p89 = scmp.eq.s32.totalorder %s16, 1
      %p90 = scmp.ne.s32.totalorder %s85, %s87
      %p91 = scmp.eq.s32.totalorder %s16, 0
      %p92 = por %p90, %p91
      %p93 = scmp.ne.s32.totalorder %s85, %s87
      %p94 = scmp.eq.s32.totalorder %s21, 1
      %p95 = por %p93, %p94
      %p96 = scmp.ne.s32.totalorder %s87, %s88
      %p97 = scmp.eq.s32.totalorder %s21, 0
      %p98 = por %p96, %p97
      %p99 = scmp.ne.s32.totalorder %s87, %s88
      %p100 = scmp.eq.s32.totalorder %s22, 1
      %p101 = por %p99, %p100
      %p103 = scmp.ne.s32.totalorder %s88, %s102
      %p104 = scmp.eq.s32.totalorder %s22, 0
      %p105 = por %p103, %p104
      %s106 = ssub.s32 %s23, %s35
      %s107 = ssub.s32 %s24, %s31
      %s108 = sor.u32 %s106, %s107
      %p109 = scmp.eq.s32.totalorder %s108, 0
      %s111 = sadd.s32 %s110, 1
      %s112 = scalar_select %p109, %s110, %s111
      %p115 = pneg %p109
      %p116 = scmp.eq.s32.totalorder %s16, 1
      %p117 = por %p115, %p116
      %p118 = scmp.ne.s32.totalorder %s110, %s113
      %p119 = scmp.eq.s32.totalorder %s16, 0
      %p120 = por %p118, %p119
      %p121 = scmp.ne.s32.totalorder %s110, %s113
      %p122 = scmp.eq.s32.totalorder %s21, 1
      %p123 = por %p121, %p122
      %p124 = scmp.ne.s32.totalorder %s113, %s114
      %p125 = scmp.eq.s32.totalorder %s21, 0
      %p126 = por %p124, %p125
      %p127 = scmp.ne.s32.totalorder %s113, %s114
      %p128 = scmp.eq.s32.totalorder %s22, 1
      %p129 = por %p127, %p128
      %p131 = scmp.ne.s32.totalorder %s114, %s130
      %p132 = scmp.eq.s32.totalorder %s22, 0
      %p133 = por %p131, %p132
      %p134 = scmp.le.s32.totalorder 1, %s16
      %p135 = scmp.lt.s32.totalorder %s16, 3
      %p136 = pnand %p134, %p135
      %p137 = pneg %p136
      // Predicated region
      $region9: #{tpu_custom_call.1} parent=5 // pred_check
        _
      $region10: #{tpu_custom_call.1} parent=5 // pred_check_branch
        %139 = sbr.rel (%p136) target = $region12
      $region11: #{tpu_custom_call.1} parent=5 // pred_region
        %s140 = ssub.s32 %s16, 1
        // Predicated region
        $region13: #{tpu_custom_call.1} parent=11 // pred_check
          %p141 = pneg %p77
        $region14: #{tpu_custom_call.1} parent=11 // pred_check_branch
          %143 = sbr.rel (%p141) target = $region16
        $region15: #{tpu_custom_call.1} parent=11 // pred_region
          %s145 = ssub.s32 18432, 18432
          %146 = vsyncadd [#allocation6], %s145
          %s147 = sshll.u32 [#allocation5], 4
          %s148 = int_to_ptr.vmem [resolvable:$true] %s147
          %153 = dma.hbm_to_vmem [thread:$0]  %s1, 18432, %s148, [#allocation6], 128, 128, 8
        $region16: #{tpu_custom_call.1} parent=11 // pred_fallthru
          _
        // Predicated region
        $region17: #{tpu_custom_call.1} parent=11 // pred_check
          %p154 = pneg %p98
        $region18: #{tpu_custom_call.1} parent=11 // pred_check_branch
          %156 = sbr.rel (%p154) target = $region20
        $region19: #{tpu_custom_call.1} parent=11 // pred_region
          _
        $region20: #{tpu_custom_call.1} parent=11 // pred_fallthru
          _
      $region12: #{tpu_custom_call.1} parent=5 // pred_fallthru
        _
      %p157 = scmp.lt.s32.totalorder %s16, 2
      // Predicated region
      $region21: #{tpu_custom_call.1} parent=5 // pred_check
        %p158 = pneg %p157
      $region22: #{tpu_custom_call.1} parent=5 // pred_check_branch
        %160 = sbr.rel (%p158) target = $region24
      $region23: #{tpu_custom_call.1} parent=5 // pred_region
        // Predicated region
        $region25: #{tpu_custom_call.1} parent=23 // pred_check
          %p161 = pneg %p50
        $region26: #{tpu_custom_call.1} parent=23 // pred_check_branch
          %163 = sbr.rel (%p161) target = $region28
        $region27: #{tpu_custom_call.1} parent=23 // pred_region
          %s164 = sand.u32 %s40, 1
          %s165 = scalar_lea.sflag [#allocation3], %s164
          %s166 = sand.u32 %s40, 1
          %s167 = smul.addr %s166, 352
          %s168 = scalar_lea.vmem [#allocation2], %s167
          %s170 = ssub.s32 5632, 5632
          %171 = vsyncadd %s165, %s170
          %s172 = smul.addr %s24, 11
          %s173 = smul.addr %s23, 44
          %s174 = sadd.s32 %s172, %s173
          %s175 = smul.addr %s174, 128
          %s176 = scalar_lea.hbm %s0, %s175
          %s177 = sshll.u32 %s168, 4
          %s178 = int_to_ptr.vmem [resolvable:$true] %s177
          %183 = dma.hbm_to_vmem [thread:$0]  %s176, 5632, %s178, %s165, 128, 128, 8
        $region28: #{tpu_custom_call.1} parent=23 // pred_fallthru
          _
      $region24: #{tpu_custom_call.1} parent=5 // pred_fallthru
        _
      %p184 = scmp.le.s32.totalorder 1, %s16
      %p185 = scmp.lt.s32.totalorder %s16, 3
      %p186 = pnand %p184, %p185
      %p187 = pneg %p186
      // Predicated region
      $region29: #{tpu_custom_call.1} parent=5 // pred_check
        _
      $region30: #{tpu_custom_call.1} parent=5 // pred_check_branch
        %189 = sbr.rel (%p186) target = $region32
      $region31: #{tpu_custom_call.1} parent=5 // pred_region
        %s190 = ssub.s32 %s16, 1
        %s191 = sand.u32 %s43, 1
        %s192 = scalar_lea.sflag [#allocation3], %s191
        %s193 = sand.u32 %s43, 1
        %s194 = smul.addr %s193, 352
        %s195 = scalar_lea.vmem [#allocation2], %s194
        // Predicated region
        $region33: #{tpu_custom_call.1} parent=31 // pred_check
          %p196 = pneg %p56
        $region34: #{tpu_custom_call.1} parent=31 // pred_check_branch
          %198 = sbr.rel (%p196) target = $region36
        $region35: #{tpu_custom_call.1} parent=31 // pred_region
          %199 = dma.done %s192, 5632
        $region36: #{tpu_custom_call.1} parent=31 // pred_fallthru
          _
        // Predicated region
        $region37: #{tpu_custom_call.1} parent=31 // pred_check
          %p200 = pneg %p77
        $region38: #{tpu_custom_call.1} parent=31 // pred_check_branch
          %202 = sbr.rel (%p200) target = $region40
        $region39: #{tpu_custom_call.1} parent=31 // pred_region
          %203 = dma.done [#allocation6], 18432
        $region40: #{tpu_custom_call.1} parent=31 // pred_fallthru
          _
        %s204 = sand.u32 %s43, 1
        %s205 = scalar_lea.sflag [#allocation3], %s204
        %s206 = sand.u32 %s43, 1
        %s207 = smul.addr %s206, 352
        %s208 = scalar_lea.vmem [#allocation2], %s207
        %p209 = pneg %p56
        %p210 = pneg %p53
        %p211 = pneg %p77
        %p212 = pneg %p74
        %p213 = pneg %p98
        %p214 = pneg %p95
        %p215 = pneg %p126
        %p216 = pneg %p123
        %s217 = sand.u32 %s113, 1
        %s218 = scalar_lea.sflag [#allocation4], %s217
        %s219 = sand.u32 %s113, 1
        %s220 = smul.addr %s219, 72
        %s221 = scalar_lea.vmem [#allocation7], %s220
        %s222 = smul.u32 9, %s26
        %v223 = vld [vmem:[%s195] sm:$0xff]
        %v224 = vld [vmem:[%s195 + $0x8] sm:$0xff]
        %v225 = vld [vmem:[%s195 + $0x10] sm:$0xff]
        %v226 = vld [vmem:[%s195 + $0x18] sm:$0xff]
        %v227 = vld [vmem:[%s195 + $0x20] sm:$0xff]
        %v228 = vld [vmem:[%s195 + $0x28] sm:$0xff]
        %v229 = vld [vmem:[%s195 + $0x30] sm:$0xff]
        %v230 = vld [vmem:[%s195 + $0x38] sm:$0xff]
        %v231 = vld [vmem:[%s195 + $0x40] sm:$0xff]
        %v232 = vld [vmem:[#allocation5] sm:$0xff]
        %v233 = vld [vmem:[#allocation5 + $0x8] sm:$0xff]
        %v234 = vld [vmem:[#allocation5 + $0x10] sm:$0xff]
        %v235 = vld [vmem:[#allocation5 + $0x18] sm:$0xff]
        %v236 = vld [vmem:[#allocation5 + $0x20] sm:$0xff]
        %v237 = vld [vmem:[#allocation5 + $0x28] sm:$0xff]
        %v238 = vld [vmem:[#allocation5 + $0x30] sm:$0xff]
        %v239 = vld [vmem:[#allocation5 + $0x38] sm:$0xff]
        %v240 = vld [vmem:[#allocation5 + $0x40] sm:$0xff]
        %v241 = vld [vmem:[#allocation5 + $0x48] sm:$0xff]
        %v242 = vld [vmem:[#allocation5 + $0x50] sm:$0xff]
        %v243 = vld [vmem:[#allocation5 + $0x58] sm:$0xff]
        %v244 = vld [vmem:[#allocation5 + $0x60] sm:$0xff]
        %v245 = vld [vmem:[#allocation5 + $0x68] sm:$0xff]
        %v246 = vld [vmem:[#allocation5 + $0x70] sm:$0xff]
        %v247 = vld [vmem:[#allocation5 + $0x78] sm:$0xff]
        %s248 = scalar_lea.vmem %s195, 88 [#allocation2]
        %v249 = vld [vmem:[%s248] sm:$0xff]
        %v250 = vld [vmem:[%s248 + $0x8] sm:$0xff]
        %v251 = vld [vmem:[%s248 + $0x10] sm:$0xff]
        %v252 = vld [vmem:[%s248 + $0x18] sm:$0xff]
        %v253 = vld [vmem:[%s248 + $0x20] sm:$0xff]
        %v254 = vld [vmem:[%s248 + $0x28] sm:$0xff]
        %v255 = vld [vmem:[%s248 + $0x30] sm:$0xff]
        %v256 = vld [vmem:[%s248 + $0x38] sm:$0xff]
        %v257 = vld [vmem:[%s248 + $0x40] sm:$0xff]
        %s258 = scalar_lea.vmem [#allocation5], 128
        %v259 = vld [vmem:[%s258] sm:$0xff]
        %v260 = vld [vmem:[%s258 + $0x8] sm:$0xff]
        %v261 = vld [vmem:[%s258 + $0x10] sm:$0xff]
        %v262 = vld [vmem:[%s258 + $0x18] sm:$0xff]
        %v263 = vld [vmem:[%s258 + $0x20] sm:$0xff]
        %v264 = vld [vmem:[%s258 + $0x28] sm:$0xff]
        %v265 = vld [vmem:[%s258 + $0x30] sm:$0xff]
        %v266 = vld [vmem:[%s258 + $0x38] sm:$0xff]
        %v267 = vld [vmem:[%s258 + $0x40] sm:$0xff]
        %v268 = vld [vmem:[%s258 + $0x48] sm:$0xff]
        %v269 = vld [vmem:[%s258 + $0x50] sm:$0xff]
        %v270 = vld [vmem:[%s258 + $0x58] sm:$0xff]
        %v271 = vld [vmem:[%s258 + $0x60] sm:$0xff]
        %v272 = vld [vmem:[%s258 + $0x68] sm:$0xff]
        %v273 = vld [vmem:[%s258 + $0x70] sm:$0xff]
        %v274 = vld [vmem:[%s258 + $0x78] sm:$0xff]
        %275 = vmatprep.subr.mxu0 0.0
        %276 = vmatpush1.msra.mxu0 %v259
        %277 = vmatprep.subr.mxu0 0.0
        %278 = vmatpush1.msra.mxu0 %v260
        %279 = vmatprep.subr.mxu0 0.0
        %280 = vmatpush1.msra.mxu0 %v261
        %281 = vmatprep.subr.mxu0 0.0
        %282 = vmatpush1.msra.mxu0 %v262
        %283 = vmatprep.subr.mxu0 0.0
        %284 = vmatpush1.msra.mxu0 %v263
        %285 = vmatprep.subr.mxu0 0.0
        %286 = vmatpush1.msra.mxu0 %v264
        %287 = vmatprep.subr.mxu0 0.0
        %288 = vmatpush1.msra.mxu0 %v265
        %289 = vmatprep.subr.mxu0 0.0
        %290 = vmatpush1.msra.mxu0 %v266
        %291 = vmatprep.subr.mxu0 0.0
        %292 = vmatpush1.msra.mxu0 %v267
        %293 = vmatprep.subr.mxu0 0.0
        %294 = vmatpush1.msra.mxu0 %v268
        %295 = vmatprep.subr.mxu0 0.0
        %296 = vmatpush1.msra.mxu0 %v269
        %297 = vmatprep.subr.mxu0 0.0
        %298 = vmatpush1.msra.mxu0 %v270
        %299 = vmatprep.subr.mxu0 0.0
        %300 = vmatpush1.msra.mxu0 %v271
        %301 = vmatprep.subr.mxu0 0.0
        %302 = vmatpush1.msra.mxu0 %v272
        %303 = vmatprep.subr.mxu0 0.0
        %304 = vmatpush1.msra.mxu0 %v273
        %305 = vmatprep.subr.mxu0 0.0
        %306 = vmatpush1.msra.mxu0 %v274
        %307 = vmatprep.subr.mxu0 0.0
        %308 = vmatpush1.msra.mxu0 0.0
        %309 = vmatprep.subr.mxu0 0.0
        %310 = vmatpush1.msra.mxu0 0.0
        %311 = vmatprep.subr.mxu0 0.0
        %312 = vmatpush1.msra.mxu0 0.0
        %313 = vmatprep.subr.mxu0 0.0
        %314 = vmatpush1.msra.mxu0 0.0
        %315 = vmatprep.subr.mxu0 0.0
        %316 = vmatpush1.msra.mxu0 0.0
        %317 = vmatprep.subr.mxu0 0.0
        %318 = vmatpush1.msra.mxu0 0.0
        %319 = vmatprep.subr.mxu0 0.0
        %320 = vmatpush1.msra.mxu0 0.0
        %321 = vmatprep.subr.mxu0 0.0
        %322 = vmatpush1.msra.mxu0 0.0
        %323 = vmatprep.subr.mxu0 0.0
        %324 = vmatpush1.msra.mxu0 0.0
        %325 = vmatprep.subr.mxu0 0.0
        %326 = vmatpush1.msra.mxu0 0.0
        %327 = vmatprep.subr.mxu0 0.0
        %328 = vmatpush1.msra.mxu0 0.0
        %329 = vmatprep.subr.mxu0 0.0
        %330 = vmatpush1.msra.mxu0 0.0
        %331 = vmatprep.subr.mxu0 0.0
        %332 = vmatpush1.msra.mxu0 0.0
        %333 = vmatprep.subr.mxu0 0.0
        %334 = vmatpush1.msra.mxu0 0.0
        %335 = vmatprep.subr.mxu0 0.0
        %336 = vmatpush1.msra.mxu0 0.0
        %337 = vmatprep.subr.mxu0 0.0
        %338 = vmatpush1.msra.mxu0 0.0
        %339 = vmatprep.mubr.f32.mxu0 0.0
        %340 = vmatmul.mubr.f32.gmra.mrb[0].mxu0 %v249
        %v341 = vpop.f32.mrb[0].mxu0
        %v342 = vadd.f32 0.0, %v341
        %v343 = vpop.f32.mrb[0].mxu0
        %344 = vmatprep.mubr.f32.mxu0 0.0
        %345 = vmatmul.mubr.f32.gmra.mrb[0].mxu0 %v250
        %v346 = vpop.f32.mrb[0].mxu0
        %v347 = vadd.f32 0.0, %v346
        %v348 = vpop.f32.mrb[0].mxu0
        %349 = vmatprep.mubr.f32.mxu0 0.0
        %350 = vmatmul.mubr.f32.gmra.mrb[0].mxu0 %v251
        %v351 = vpop.f32.mrb[0].mxu0
        %v352 = vadd.f32 0.0, %v351
        %v353 = vpop.f32.mrb[0].mxu0
        %354 = vmatprep.mubr.f32.mxu0 0.0
        %355 = vmatmul.mubr.f32.gmra.mrb[0].mxu0 %v252
        %v356 = vpop.f32.mrb[0].mxu0
        %v357 = vadd.f32 0.0, %v356
        %v358 = vpop.f32.mrb[0].mxu0
        %359 = vmatprep.mubr.f32.mxu0 0.0
        %360 = vmatmul.mubr.f32.gmra.mrb[0].mxu0 %v253
        %v361 = vpop.f32.mrb[0].mxu0
        %v362 = vadd.f32 0.0, %v361
        %v363 = vpop.f32.mrb[0].mxu0
        %364 = vmatprep.mubr.f32.mxu0 0.0
        %365 = vmatmul.mubr.f32.gmra.mrb[0].mxu0 %v254
        %v366 = vpop.f32.mrb[0].mxu0
        %v367 = vadd.f32 0.0, %v366
        %v368 = vpop.f32.mrb[0].mxu0
        %369 = vmatprep.mubr.f32.mxu0 0.0
        %370 = vmatmul.mubr.f32.gmra.mrb[0].mxu0 %v255
        %v371 = vpop.f32.mrb[0].mxu0
        %v372 = vadd.f32 0.0, %v371
        %v373 = vpop.f32.mrb[0].mxu0
        %374 = vmatprep.mubr.f32.mxu0 0.0
        %375 = vmatmul.mubr.f32.gmra.mrb[0].mxu0 %v256
        %v376 = vpop.f32.mrb[0].mxu0
        %v377 = vadd.f32 0.0, %v376
        %v378 = vpop.f32.mrb[0].mxu0
        %379 = vmatprep.mubr.f32.mxu0 0.0
        %380 = vmatmul.mubr.f32.gmra.mrb[0].mxu0 %v257
        %v381 = vpop.f32.mrb[0].mxu0
        %v382 = vadd.f32 0.0, %v381
        %v383 = vpop.f32.mrb[0].mxu0
        %384 = vdwg.mxu0
        %385 = vmatprep.subr.mxu0 0.0
        %386 = vmatpush1.msra.mxu0 %v232
        %387 = vmatprep.subr.mxu0 0.0
        %388 = vmatpush1.msra.mxu0 %v233
        %389 = vmatprep.subr.mxu0 0.0
        %390 = vmatpush1.msra.mxu0 %v234
        %391 = vmatprep.subr.mxu0 0.0
        %392 = vmatpush1.msra.mxu0 %v235
        %393 = vmatprep.subr.mxu0 0.0
        %394 = vmatpush1.msra.mxu0 %v236
        %395 = vmatprep.subr.mxu0 0.0
        %396 = vmatpush1.msra.mxu0 %v237
        %397 = vmatprep.subr.mxu0 0.0
        %398 = vmatpush1.msra.mxu0 %v238
        %399 = vmatprep.subr.mxu0 0.0
        %400 = vmatpush1.msra.mxu0 %v239
        %401 = vmatprep.subr.mxu0 0.0
        %402 = vmatpush1.msra.mxu0 %v240
        %403 = vmatprep.subr.mxu0 0.0
        %404 = vmatpush1.msra.mxu0 %v241
        %405 = vmatprep.subr.mxu0 0.0
        %406 = vmatpush1.msra.mxu0 %v242
        %407 = vmatprep.subr.mxu0 0.0
        %408 = vmatpush1.msra.mxu0 %v243
        %409 = vmatprep.subr.mxu0 0.0
        %410 = vmatpush1.msra.mxu0 %v244
        %411 = vmatprep.subr.mxu0 0.0
        %412 = vmatpush1.msra.mxu0 %v245
        %413 = vmatprep.subr.mxu0 0.0
        %414 = vmatpush1.msra.mxu0 %v246
        %415 = vmatprep.subr.mxu0 0.0
        %416 = vmatpush1.msra.mxu0 %v247
        %417 = vmatprep.subr.mxu0 0.0
        %418 = vmatpush1.msra.mxu0 0.0
        %419 = vmatprep.subr.mxu0 0.0
        %420 = vmatpush1.msra.mxu0 0.0
        %421 = vmatprep.subr.mxu0 0.0
        %422 = vmatpush1.msra.mxu0 0.0
        %423 = vmatprep.subr.mxu0 0.0
        %424 = vmatpush1.msra.mxu0 0.0
        %425 = vmatprep.subr.mxu0 0.0
        %426 = vmatpush1.msra.mxu0 0.0
        %427 = vmatprep.subr.mxu0 0.0
        %428 = vmatpush1.msra.mxu0 0.0
        %429 = vmatprep.subr.mxu0 0.0
        %430 = vmatpush1.msra.mxu0 0.0
        %431 = vmatprep.subr.mxu0 0.0
        %432 = vmatpush1.msra.mxu0 0.0
        %433 = vmatprep.subr.mxu0 0.0
        %434 = vmatpush1.msra.mxu0 0.0
        %435 = vmatprep.subr.mxu0 0.0
        %436 = vmatpush1.msra.mxu0 0.0
        %437 = vmatprep.subr.mxu0 0.0
        %438 = vmatpush1.msra.mxu0 0.0
        %439 = vmatprep.subr.mxu0 0.0
        %440 = vmatpush1.msra.mxu0 0.0
        %441 = vmatprep.subr.mxu0 0.0
        %442 = vmatpush1.msra.mxu0 0.0
        %443 = vmatprep.subr.mxu0 0.0
        %444 = vmatpush1.msra.mxu0 0.0
        %445 = vmatprep.subr.mxu0 0.0
        %446 = vmatpush1.msra.mxu0 0.0
        %447 = vmatprep.subr.mxu0 0.0
        %448 = vmatpush1.msra.mxu0 0.0
        %449 = vmatprep.mubr.f32.mxu0 0.0
        %450 = vmatmul.mubr.f32.gmra.mrb[0].mxu0 %v223
        %v451 = vpop.f32.mrb[0].mxu0
        %v452 = vadd.f32 %v342, %v451
        %v453 = vpop.f32.mrb[0].mxu0
        %454 = vmatprep.mubr.f32.mxu0 0.0
        %455 = vmatmul.mubr.f32.gmra.mrb[0].mxu0 %v224
        %v456 = vpop.f32.mrb[0].mxu0
        %v457 = vadd.f32 %v347, %v456
        %v458 = vpop.f32.mrb[0].mxu0
        %459 = vmatprep.mubr.f32.mxu0 0.0
        %460 = vmatmul.mubr.f32.gmra.mrb[0].mxu0 %v225
        %v461 = vpop.f32.mrb[0].mxu0
        %v462 = vadd.f32 %v352, %v461
        %v463 = vpop.f32.mrb[0].mxu0
        %464 = vmatprep.mubr.f32.mxu0 0.0
        %465 = vmatmul.mubr.f32.gmra.mrb[0].mxu0 %v226
        %v466 = vpop.f32.mrb[0].mxu0
        %v467 = vadd.f32 %v357, %v466
        %v468 = vpop.f32.mrb[0].mxu0
        %469 = vmatprep.mubr.f32.mxu0 0.0
        %470 = vmatmul.mubr.f32.gmra.mrb[0].mxu0 %v227
        %v471 = vpop.f32.mrb[0].mxu0
        %v472 = vadd.f32 %v362, %v471
        %v473 = vpop.f32.mrb[0].mxu0
        %474 = vmatprep.mubr.f32.mxu0 0.0
        %475 = vmatmul.mubr.f32.gmra.mrb[0].mxu0 %v228
        %v476 = vpop.f32.mrb[0].mxu0
        %v477 = vadd.f32 %v367, %v476
        %v478 = vpop.f32.mrb[0].mxu0
        %479 = vmatprep.mubr.f32.mxu0 0.0
        %480 = vmatmul.mubr.f32.gmra.mrb[0].mxu0 %v229
        %v481 = vpop.f32.mrb[0].mxu0
        %v482 = vadd.f32 %v372, %v481
        %v483 = vpop.f32.mrb[0].mxu0
        %484 = vmatprep.mubr.f32.mxu0 0.0
        %485 = vmatmul.mubr.f32.gmra.mrb[0].mxu0 %v230
        %v486 = vpop.f32.mrb[0].mxu0
        %v487 = vadd.f32 %v377, %v486
        %v488 = vpop.f32.mrb[0].mxu0
        %489 = vmatprep.mubr.f32.mxu0 0.0
        %490 = vmatmul.mubr.f32.gmra.mrb[0].mxu0 %v231
        %v491 = vpop.f32.mrb[0].mxu0
        %v492 = vadd.f32 %v382, %v491
        %v493 = vpop.f32.mrb[0].mxu0
        %494 = vdwg.mxu0
        %v495 = vld [vmem:[%s195 + $0x1] sm:$0xff]
        %v496 = vld [vmem:[%s195 + $0x9] sm:$0xff]
        %v497 = vld [vmem:[%s195 + $0x11] sm:$0xff]
        %v498 = vld [vmem:[%s195 + $0x19] sm:$0xff]
        %v499 = vld [vmem:[%s195 + $0x21] sm:$0xff]
        %v500 = vld [vmem:[%s195 + $0x29] sm:$0xff]
        %v501 = vld [vmem:[%s195 + $0x31] sm:$0xff]
        %v502 = vld [vmem:[%s195 + $0x39] sm:$0xff]
        %v503 = vld [vmem:[%s195 + $0x41] sm:$0xff]
        %s504 = scalar_lea.vmem [#allocation5], 256
        %v505 = vld [vmem:[%s504] sm:$0xff]
        %v506 = vld [vmem:[%s504 + $0x8] sm:$0xff]
        %v507 = vld [vmem:[%s504 + $0x10] sm:$0xff]
        %v508 = vld [vmem:[%s504 + $0x18] sm:$0xff]
        %v509 = vld [vmem:[%s504 + $0x20] sm:$0xff]
        %v510 = vld [vmem:[%s504 + $0x28] sm:$0xff]
        %v511 = vld [vmem:[%s504 + $0x30] sm:$0xff]
        %v512 = vld [vmem:[%s504 + $0x38] sm:$0xff]
        %v513 = vld [vmem:[%s504 + $0x40] sm:$0xff]
        %v514 = vld [vmem:[%s504 + $0x48] sm:$0xff]
        %v515 = vld [vmem:[%s504 + $0x50] sm:$0xff]
        %v516 = vld [vmem:[%s504 + $0x58] sm:$0xff]
        %v517 = vld [vmem:[%s504 + $0x60] sm:$0xff]
        %v518 = vld [vmem:[%s504 + $0x68] sm:$0xff]
        %v519 = vld [vmem:[%s504 + $0x70] sm:$0xff]
        %v520 = vld [vmem:[%s504 + $0x78] sm:$0xff]
        %521 = vmatprep.subr.mxu0 0.0
        %522 = vmatpush1.msra.mxu0 %v505
        %523 = vmatprep.subr.mxu0 0.0
        %524 = vmatpush1.msra.mxu0 %v506
        %525 = vmatprep.subr.mxu0 0.0
        %526 = vmatpush1.msra.mxu0 %v507
        %527 = vmatprep.subr.mxu0 0.0
        %528 = vmatpush1.msra.mxu0 %v508
        %529 = vmatprep.subr.mxu0 0.0
        %530 = vmatpush1.msra.mxu0 %v509
        %531 = vmatprep.subr.mxu0 0.0
        %532 = vmatpush1.msra.mxu0 %v510
        %533 = vmatprep.subr.mxu0 0.0
        %534 = vmatpush1.msra.mxu0 %v511
        %535 = vmatprep.subr.mxu0 0.0
        %536 = vmatpush1.msra.mxu0 %v512
        %537 = vmatprep.subr.mxu0 0.0
        %538 = vmatpush1.msra.mxu0 %v513
        %539 = vmatprep.subr.mxu0 0.0
        %540 = vmatpush1.msra.mxu0 %v514
        %541 = vmatprep.subr.mxu0 0.0
        %542 = vmatpush1.msra.mxu0 %v515
        %543 = vmatprep.subr.mxu0 0.0
        %544 = vmatpush1.msra.mxu0 %v516
        %545 = vmatprep.subr.mxu0 0.0
        %546 = vmatpush1.msra.mxu0 %v517
        %547 = vmatprep.subr.mxu0 0.0
        %548 = vmatpush1.msra.mxu0 %v518
        %549 = vmatprep.subr.mxu0 0.0
        %550 = vmatpush1.msra.mxu0 %v519
        %551 = vmatprep.subr.mxu0 0.0
        %552 = vmatpush1.msra.mxu0 %v520
        %553 = vmatprep.subr.mxu0 0.0
        %554 = vmatpush1.msra.mxu0 0.0
        %555 = vmatprep.subr.mxu0 0.0
        %556 = vmatpush1.msra.mxu0 0.0
        %557 = vmatprep.subr.mxu0 0.0
        %558 = vmatpush1.msra.mxu0 0.0
        %559 = vmatprep.subr.mxu0 0.0
        %560 = vmatpush1.msra.mxu0 0.0
        %561 = vmatprep.subr.mxu0 0.0
        %562 = vmatpush1.msra.mxu0 0.0
        %563 = vmatprep.subr.mxu0 0.0
        %564 = vmatpush1.msra.mxu0 0.0
        %565 = vmatprep.subr.mxu0 0.0
        %566 = vmatpush1.msra.mxu0 0.0
        %567 = vmatprep.subr.mxu0 0.0
        %568 = vmatpush1.msra.mxu0 0.0
        %569 = vmatprep.subr.mxu0 0.0
        %570 = vmatpush1.msra.mxu0 0.0
        %571 = vmatprep.subr.mxu0 0.0
        %572 = vmatpush1.msra.mxu0 0.0
        %573 = vmatprep.subr.mxu0 0.0
        %574 = vmatpush1.msra.mxu0 0.0
        %575 = vmatprep.subr.mxu0 0.0
        %576 = vmatpush1.msra.mxu0 0.0
        %577 = vmatprep.subr.mxu0 0.0
        %578 = vmatpush1.msra.mxu0 0.0
        %579 = vmatprep.subr.mxu0 0.0
        %580 = vmatpush1.msra.mxu0 0.0
        %581 = vmatprep.subr.mxu0 0.0
        %582 = vmatpush1.msra.mxu0 0.0
        %583 = vmatprep.subr.mxu0 0.0
        %584 = vmatpush1.msra.mxu0 0.0
        %585 = vmatprep.mubr.f32.mxu0 0.0
        %586 = vmatmul.mubr.f32.gmra.mrb[0].mxu0 %v495
        %v587 = vpop.f32.mrb[0].mxu0
        %v588 = vadd.f32 0.0, %v587
        %v589 = vpop.f32.mrb[0].mxu0
        %590 = vmatprep.mubr.f32.mxu0 0.0
        %591 = vmatmul.mubr.f32.gmra.mrb[0].mxu0 %v496
        %v592 = vpop.f32.mrb[0].mxu0
        %v593 = vadd.f32 0.0, %v592
        %v594 = vpop.f32.mrb[0].mxu0
        %595 = vmatprep.mubr.f32.mxu0 0.0
        %596 = vmatmul.mubr.f32.gmra.mrb[0].mxu0 %v497
        %v597 = vpop.f32.mrb[0].mxu0
        %v598 = vadd.f32 0.0, %v597
        %v599 = vpop.f32.mrb[0].mxu0
        %600 = vmatprep.mubr.f32.mxu0 0.0
        %601 = vmatmul.mubr.f32.gmra.mrb[0].mxu0 %v498
        %v602 = vpop.f32.mrb[0].mxu0
        %v603 = vadd.f32 0.0, %v602
        %v604 = vpop.f32.mrb[0].mxu0
        %605 = vmatprep.mubr.f32.mxu0 0.0
        %606 = vmatmul.mubr.f32.gmra.mrb[0].mxu0 %v499
        %v607 = vpop.f32.mrb[0].mxu0
        %v608 = vadd.f32 0.0, %v607
        %v609 = vpop.f32.mrb[0].mxu0
        %610 = vmatprep.mubr.f32.mxu0 0.0
        %611 = vmatmul.mubr.f32.gmra.mrb[0].mxu0 %v500
        %v612 = vpop.f32.mrb[0].mxu0
        %v613 = vadd.f32 0.0, %v612
        %v614 = vpop.f32.mrb[0].mxu0
        %615 = vmatprep.mubr.f32.mxu0 0.0
        %616 = vmatmul.mubr.f32.gmra.mrb[0].mxu0 %v501
        %v617 = vpop.f32.mrb[0].mxu0
        %v618 = vadd.f32 0.0, %v617
        %v619 = vpop.f32.mrb[0].mxu0
        %620 = vmatprep.mubr.f32.mxu0 0.0
        %621 = vmatmul.mubr.f32.gmra.mrb[0].mxu0 %v502
        %v622 = vpop.f32.mrb[0].mxu0
        %v623 = vadd.f32 0.0, %v622
        %v624 = vpop.f32.mrb[0].mxu0
        %625 = vmatprep.mubr.f32.mxu0 0.0
        %626 = vmatmul.mubr.f32.gmra.mrb[0].mxu0 %v503
        %v627 = vpop.f32.mrb[0].mxu0
        %v628 = vadd.f32 0.0, %v627
        %v629 = vpop.f32.mrb[0].mxu0
        %630 = vdwg.mxu0
        %v631 = vadd.f32 %v452, %v588
        %v632 = vadd.f32 %v457, %v593
        %v633 = vadd.f32 %v462, %v598
        %v634 = vadd.f32 %v467, %v603
        %v635 = vadd.f32 %v472, %v608
        %v636 = vadd.f32 %v477, %v613
        %v637 = vadd.f32 %v482, %v618
        %v638 = vadd.f32 %v487, %v623
        %v639 = vadd.f32 %v492, %v628
        %s640 = scalar_lea.vmem %s195, 176 [#allocation2]
        %v641 = vld [vmem:[%s640] sm:$0xff]
        %v642 = vld [vmem:[%s640 + $0x8] sm:$0xff]
        %v643 = vld [vmem:[%s640 + $0x10] sm:$0xff]
        %v644 = vld [vmem:[%s640 + $0x18] sm:$0xff]
        %v645 = vld [vmem:[%s640 + $0x20] sm:$0xff]
        %v646 = vld [vmem:[%s640 + $0x28] sm:$0xff]
        %v647 = vld [vmem:[%s640 + $0x30] sm:$0xff]
        %v648 = vld [vmem:[%s640 + $0x38] sm:$0xff]
        %v649 = vld [vmem:[%s640 + $0x40] sm:$0xff]
        %s650 = scalar_lea.vmem [#allocation5], 384
        %v651 = vld [vmem:[%s650] sm:$0xff]
        %v652 = vld [vmem:[%s650 + $0x8] sm:$0xff]
        %v653 = vld [vmem:[%s650 + $0x10] sm:$0xff]
        %v654 = vld [vmem:[%s650 + $0x18] sm:$0xff]
        %v655 = vld [vmem:[%s650 + $0x20] sm:$0xff]
        %v656 = vld [vmem:[%s650 + $0x28] sm:$0xff]
        %v657 = vld [vmem:[%s650 + $0x30] sm:$0xff]
        %v658 = vld [vmem:[%s650 + $0x38] sm:$0xff]
        %v659 = vld [vmem:[%s650 + $0x40] sm:$0xff]
        %v660 = vld [vmem:[%s650 + $0x48] sm:$0xff]
        %v661 = vld [vmem:[%s650 + $0x50] sm:$0xff]
        %v662 = vld [vmem:[%s650 + $0x58] sm:$0xff]
        %v663 = vld [vmem:[%s650 + $0x60] sm:$0xff]
        %v664 = vld [vmem:[%s650 + $0x68] sm:$0xff]
        %v665 = vld [vmem:[%s650 + $0x70] sm:$0xff]
        %v666 = vld [vmem:[%s650 + $0x78] sm:$0xff]
        %667 = vmatprep.subr.mxu0 0.0
        %668 = vmatpush1.msra.mxu0 %v651
        %669 = vmatprep.subr.mxu0 0.0
        %670 = vmatpush1.msra.mxu0 %v652
        %671 = vmatprep.subr.mxu0 0.0
        %672 = vmatpush1.msra.mxu0 %v653
        %673 = vmatprep.subr.mxu0 0.0
        %674 = vmatpush1.msra.mxu0 %v654
        %675 = vmatprep.subr.mxu0 0.0
        %676 = vmatpush1.msra.mxu0 %v655
        %677 = vmatprep.subr.mxu0 0.0
        %678 = vmatpush1.msra.mxu0 %v656
        %679 = vmatprep.subr.mxu0 0.0
        %680 = vmatpush1.msra.mxu0 %v657
        %681 = vmatprep.subr.mxu0 0.0
        %682 = vmatpush1.msra.mxu0 %v658
        %683 = vmatprep.subr.mxu0 0.0
        %684 = vmatpush1.msra.mxu0 %v659
        %685 = vmatprep.subr.mxu0 0.0
        %686 = vmatpush1.msra.mxu0 %v660
        %687 = vmatprep.subr.mxu0 0.0
        %688 = vmatpush1.msra.mxu0 %v661
        %689 = vmatprep.subr.mxu0 0.0
        %690 = vmatpush1.msra.mxu0 %v662
        %691 = vmatprep.subr.mxu0 0.0
        %692 = vmatpush1.msra.mxu0 %v663
        %693 = vmatprep.subr.mxu0 0.0
        %694 = vmatpush1.msra.mxu0 %v664
        %695 = vmatprep.subr.mxu0 0.0
        %696 = vmatpush1.msra.mxu0 %v665
        %697 = vmatprep.subr.mxu0 0.0
        %698 = vmatpush1.msra.mxu0 %v666
        %699 = vmatprep.subr.mxu0 0.0
        %700 = vmatpush1.msra.mxu0 0.0
        %701 = vmatprep.subr.mxu0 0.0
        %702 = vmatpush1.msra.mxu0 0.0
        %703 = vmatprep.subr.mxu0 0.0
        %704 = vmatpush1.msra.mxu0 0.0
        %705 = vmatprep.subr.mxu0 0.0
        %706 = vmatpush1.msra.mxu0 0.0
        %707 = vmatprep.subr.mxu0 0.0
        %708 = vmatpush1.msra.mxu0 0.0
        %709 = vmatprep.subr.mxu0 0.0
        %710 = vmatpush1.msra.mxu0 0.0
        %711 = vmatprep.subr.mxu0 0.0
        %712 = vmatpush1.msra.mxu0 0.0
        %713 = vmatprep.subr.mxu0 0.0
        %714 = vmatpush1.msra.mxu0 0.0
        %715 = vmatprep.subr.mxu0 0.0
        %716 = vmatpush1.msra.mxu0 0.0
        %717 = vmatprep.subr.mxu0 0.0
        %718 = vmatpush1.msra.mxu0 0.0
        %719 = vmatprep.subr.mxu0 0.0
        %720 = vmatpush1.msra.mxu0 0.0
        %721 = vmatprep.subr.mxu0 0.0
        %722 = vmatpush1.msra.mxu0 0.0
        %723 = vmatprep.subr.mxu0 0.0
        %724 = vmatpush1.msra.mxu0 0.0
        %725 = vmatprep.subr.mxu0 0.0
        %726 = vmatpush1.msra.mxu0 0.0
        %727 = vmatprep.subr.mxu0 0.0
        %728 = vmatpush1.msra.mxu0 0.0
        %729 = vmatprep.subr.mxu0 0.0
        %730 = vmatpush1.msra.mxu0 0.0
        %731 = vmatprep.mubr.f32.mxu0 0.0
        %732 = vmatmul.mubr.f32.gmra.mrb[0].mxu0 %v641
        %v733 = vpop.f32.mrb[0].mxu0
        %v734 = vadd.f32 0.0, %v733
        %v735 = vpop.f32.mrb[0].mxu0
        %736 = vmatprep.mubr.f32.mxu0 0.0
        %737 = vmatmul.mubr.f32.gmra.mrb[0].mxu0 %v642
        %v738 = vpop.f32.mrb[0].mxu0
        %v739 = vadd.f32 0.0, %v738
        %v740 = vpop.f32.mrb[0].mxu0
        %741 = vmatprep.mubr.f32.mxu0 0.0
        %742 = vmatmul.mubr.f32.gmra.mrb[0].mxu0 %v643
        %v743 = vpop.f32.mrb[0].mxu0
        %v744 = vadd.f32 0.0, %v743
        %v745 = vpop.f32.mrb[0].mxu0
        %746 = vmatprep.mubr.f32.mxu0 0.0
        %747 = vmatmul.mubr.f32.gmra.mrb[0].mxu0 %v644
        %v748 = vpop.f32.mrb[0].mxu0
        %v749 = vadd.f32 0.0, %v748
        %v750 = vpop.f32.mrb[0].mxu0
        %751 = vmatprep.mubr.f32.mxu0 0.0
        %752 = vmatmul.mubr.f32.gmra.mrb[0].mxu0 %v645
        %v753 = vpop.f32.mrb[0].mxu0
        %v754 = vadd.f32 0.0, %v753
        %v755 = vpop.f32.mrb[0].mxu0
        %756 = vmatprep.mubr.f32.mxu0 0.0
        %757 = vmatmul.mubr.f32.gmra.mrb[0].mxu0 %v646
        %v758 = vpop.f32.mrb[0].mxu0
        %v759 = vadd.f32 0.0, %v758
        %v760 = vpop.f32.mrb[0].mxu0
        %761 = vmatprep.mubr.f32.mxu0 0.0
        %762 = vmatmul.mubr.f32.gmra.mrb[0].mxu0 %v647
        %v763 = vpop.f32.mrb[0].mxu0
        %v764 = vadd.f32 0.0, %v763
        %v765 = vpop.f32.mrb[0].mxu0
        %766 = vmatprep.mubr.f32.mxu0 0.0
        %767 = vmatmul.mubr.f32.gmra.mrb[0].mxu0 %v648
        %v768 = vpop.f32.mrb[0].mxu0
        %v769 = vadd.f32 0.0, %v768
        %v770 = vpop.f32.mrb[0].mxu0
        %771 = vmatprep.mubr.f32.mxu0 0.0
        %772 = vmatmul.mubr.f32.gmra.mrb[0].mxu0 %v649
        %v773 = vpop.f32.mrb[0].mxu0
        %v774 = vadd.f32 0.0, %v773
        %v775 = vpop.f32.mrb[0].mxu0
        %776 = vdwg.mxu0
        %v777 = vadd.f32 %v631, %v734
        %v778 = vadd.f32 %v632, %v739
        %v779 = vadd.f32 %v633, %v744
        %v780 = vadd.f32 %v634, %v749
        %v781 = vadd.f32 %v635, %v754
        %v782 = vadd.f32 %v636, %v759
        %v783 = vadd.f32 %v637, %v764
        %v784 = vadd.f32 %v638, %v769
        %v785 = vadd.f32 %v639, %v774
        %s786 = scalar_lea.vmem %s195, 264 [#allocation2]
        %v787 = vld [vmem:[%s786] sm:$0xff]
        %v788 = vld [vmem:[%s786 + $0x8] sm:$0xff]
        %v789 = vld [vmem:[%s786 + $0x10] sm:$0xff]
        %v790 = vld [vmem:[%s786 + $0x18] sm:$0xff]
        %v791 = vld [vmem:[%s786 + $0x20] sm:$0xff]
        %v792 = vld [vmem:[%s786 + $0x28] sm:$0xff]
        %v793 = vld [vmem:[%s786 + $0x30] sm:$0xff]
        %v794 = vld [vmem:[%s786 + $0x38] sm:$0xff]
        %v795 = vld [vmem:[%s786 + $0x40] sm:$0xff]
        %s796 = scalar_lea.vmem [#allocation5], 512
        %v797 = vld [vmem:[%s796] sm:$0xff]
        %v798 = vld [vmem:[%s796 + $0x8] sm:$0xff]
        %v799 = vld [vmem:[%s796 + $0x10] sm:$0xff]
        %v800 = vld [vmem:[%s796 + $0x18] sm:$0xff]
        %v801 = vld [vmem:[%s796 + $0x20] sm:$0xff]
        %v802 = vld [vmem:[%s796 + $0x28] sm:$0xff]
        %v803 = vld [vmem:[%s796 + $0x30] sm:$0xff]
        %v804 = vld [vmem:[%s796 + $0x38] sm:$0xff]
        %v805 = vld [vmem:[%s796 + $0x40] sm:$0xff]
        %v806 = vld [vmem:[%s796 + $0x48] sm:$0xff]
        %v807 = vld [vmem:[%s796 + $0x50] sm:$0xff]
        %v808 = vld [vmem:[%s796 + $0x58] sm:$0xff]
        %v809 = vld [vmem:[%s796 + $0x60] sm:$0xff]
        %v810 = vld [vmem:[%s796 + $0x68] sm:$0xff]
        %v811 = vld [vmem:[%s796 + $0x70] sm:$0xff]
        %v812 = vld [vmem:[%s796 + $0x78] sm:$0xff]
        %813 = vmatprep.subr.mxu0 0.0
        %814 = vmatpush1.msra.mxu0 %v797
        %815 = vmatprep.subr.mxu0 0.0
        %816 = vmatpush1.msra.mxu0 %v798
        %817 = vmatprep.subr.mxu0 0.0
        %818 = vmatpush1.msra.mxu0 %v799
        %819 = vmatprep.subr.mxu0 0.0
        %820 = vmatpush1.msra.mxu0 %v800
        %821 = vmatprep.subr.mxu0 0.0
        %822 = vmatpush1.msra.mxu0 %v801
        %823 = vmatprep.subr.mxu0 0.0
        %824 = vmatpush1.msra.mxu0 %v802
        %825 = vmatprep.subr.mxu0 0.0
        %826 = vmatpush1.msra.mxu0 %v803
        %827 = vmatprep.subr.mxu0 0.0
        %828 = vmatpush1.msra.mxu0 %v804
        %829 = vmatprep.subr.mxu0 0.0
        %830 = vmatpush1.msra.mxu0 %v805
        %831 = vmatprep.subr.mxu0 0.0
        %832 = vmatpush1.msra.mxu0 %v806
        %833 = vmatprep.subr.mxu0 0.0
        %834 = vmatpush1.msra.mxu0 %v807
        %835 = vmatprep.subr.mxu0 0.0
        %836 = vmatpush1.msra.mxu0 %v808
        %837 = vmatprep.subr.mxu0 0.0
        %838 = vmatpush1.msra.mxu0 %v809
        %839 = vmatprep.subr.mxu0 0.0
        %840 = vmatpush1.msra.mxu0 %v810
        %841 = vmatprep.subr.mxu0 0.0
        %842 = vmatpush1.msra.mxu0 %v811
        %843 = vmatprep.subr.mxu0 0.0
        %844 = vmatpush1.msra.mxu0 %v812
        %845 = vmatprep.subr.mxu0 0.0
        %846 = vmatpush1.msra.mxu0 0.0
        %847 = vmatprep.subr.mxu0 0.0
        %848 = vmatpush1.msra.mxu0 0.0
        %849 = vmatprep.subr.mxu0 0.0
        %850 = vmatpush1.msra.mxu0 0.0
        %851 = vmatprep.subr.mxu0 0.0
        %852 = vmatpush1.msra.mxu0 0.0
        %853 = vmatprep.subr.mxu0 0.0
        %854 = vmatpush1.msra.mxu0 0.0
        %855 = vmatprep.subr.mxu0 0.0
        %856 = vmatpush1.msra.mxu0 0.0
        %857 = vmatprep.subr.mxu0 0.0
        %858 = vmatpush1.msra.mxu0 0.0
        %859 = vmatprep.subr.mxu0 0.0
        %860 = vmatpush1.msra.mxu0 0.0
        %861 = vmatprep.subr.mxu0 0.0
        %862 = vmatpush1.msra.mxu0 0.0
        %863 = vmatprep.subr.mxu0 0.0
        %864 = vmatpush1.msra.mxu0 0.0
        %865 = vmatprep.subr.mxu0 0.0
        %866 = vmatpush1.msra.mxu0 0.0
        %867 = vmatprep.subr.mxu0 0.0
        %868 = vmatpush1.msra.mxu0 0.0
        %869 = vmatprep.subr.mxu0 0.0
        %870 = vmatpush1.msra.mxu0 0.0
        %871 = vmatprep.subr.mxu0 0.0
        %872 = vmatpush1.msra.mxu0 0.0
        %873 = vmatprep.subr.mxu0 0.0
        %874 = vmatpush1.msra.mxu0 0.0
        %875 = vmatprep.subr.mxu0 0.0
        %876 = vmatpush1.msra.mxu0 0.0
        %877 = vmatprep.mubr.f32.mxu0 0.0
        %878 = vmatmul.mubr.f32.gmra.mrb[0].mxu0 %v787
        %v879 = vpop.f32.mrb[0].mxu0
        %v880 = vadd.f32 0.0, %v879
        %v881 = vpop.f32.mrb[0].mxu0
        %882 = vmatprep.mubr.f32.mxu0 0.0
        %883 = vmatmul.mubr.f32.gmra.mrb[0].mxu0 %v788
        %v884 = vpop.f32.mrb[0].mxu0
        %v885 = vadd.f32 0.0, %v884
        %v886 = vpop.f32.mrb[0].mxu0
        %887 = vmatprep.mubr.f32.mxu0 0.0
        %888 = vmatmul.mubr.f32.gmra.mrb[0].mxu0 %v789
        %v889 = vpop.f32.mrb[0].mxu0
        %v890 = vadd.f32 0.0, %v889
        %v891 = vpop.f32.mrb[0].mxu0
        %892 = vmatprep.mubr.f32.mxu0 0.0
        %893 = vmatmul.mubr.f32.gmra.mrb[0].mxu0 %v790
        %v894 = vpop.f32.mrb[0].mxu0
        %v895 = vadd.f32 0.0, %v894
        %v896 = vpop.f32.mrb[0].mxu0
        %897 = vmatprep.mubr.f32.mxu0 0.0
        %898 = vmatmul.mubr.f32.gmra.mrb[0].mxu0 %v791
        %v899 = vpop.f32.mrb[0].mxu0
        %v900 = vadd.f32 0.0, %v899
        %v901 = vpop.f32.mrb[0].mxu0
        %902 = vmatprep.mubr.f32.mxu0 0.0
        %903 = vmatmul.mubr.f32.gmra.mrb[0].mxu0 %v792
        %v904 = vpop.f32.mrb[0].mxu0
        %v905 = vadd.f32 0.0, %v904
        %v906 = vpop.f32.mrb[0].mxu0
        %907 = vmatprep.mubr.f32.mxu0 0.0
        %908 = vmatmul.mubr.f32.gmra.mrb[0].mxu0 %v793
        %v909 = vpop.f32.mrb[0].mxu0
        %v910 = vadd.f32 0.0, %v909
        %v911 = vpop.f32.mrb[0].mxu0
        %912 = vmatprep.mubr.f32.mxu0 0.0
        %913 = vmatmul.mubr.f32.gmra.mrb[0].mxu0 %v794
        %v914 = vpop.f32.mrb[0].mxu0
        %v915 = vadd.f32 0.0, %v914
        %v916 = vpop.f32.mrb[0].mxu0
        %917 = vmatprep.mubr.f32.mxu0 0.0
        %918 = vmatmul.mubr.f32.gmra.mrb[0].mxu0 %v795
        %v919 = vpop.f32.mrb[0].mxu0
        %v920 = vadd.f32 0.0, %v919
        %v921 = vpop.f32.mrb[0].mxu0
        %922 = vdwg.mxu0
        %v923 = vadd.f32 %v777, %v880
        %v924 = vadd.f32 %v778, %v885
        %v925 = vadd.f32 %v779, %v890
        %v926 = vadd.f32 %v780, %v895
        %v927 = vadd.f32 %v781, %v900
        %v928 = vadd.f32 %v782, %v905
        %v929 = vadd.f32 %v783, %v910
        %v930 = vadd.f32 %v784, %v915
        %v931 = vadd.f32 %v785, %v920
        %v932 = vld [vmem:[%s640 + $0x1] sm:$0xff]
        %v933 = vld [vmem:[%s640 + $0x9] sm:$0xff]
        %v934 = vld [vmem:[%s640 + $0x11] sm:$0xff]
        %v935 = vld [vmem:[%s640 + $0x19] sm:$0xff]
        %v936 = vld [vmem:[%s640 + $0x21] sm:$0xff]
        %v937 = vld [vmem:[%s640 + $0x29] sm:$0xff]
        %v938 = vld [vmem:[%s640 + $0x31] sm:$0xff]
        %v939 = vld [vmem:[%s640 + $0x39] sm:$0xff]
        %v940 = vld [vmem:[%s640 + $0x41] sm:$0xff]
        %s941 = scalar_lea.vmem [#allocation5], 640
        %v942 = vld [vmem:[%s941] sm:$0xff]
        %v943 = vld [vmem:[%s941 + $0x8] sm:$0xff]
        %v944 = vld [vmem:[%s941 + $0x10] sm:$0xff]
        %v945 = vld [vmem:[%s941 + $0x18] sm:$0xff]
        %v946 = vld [vmem:[%s941 + $0x20] sm:$0xff]
        %v947 = vld [vmem:[%s941 + $0x28] sm:$0xff]
        %v948 = vld [vmem:[%s941 + $0x30] sm:$0xff]
        %v949 = vld [vmem:[%s941 + $0x38] sm:$0xff]
        %v950 = vld [vmem:[%s941 + $0x40] sm:$0xff]
        %v951 = vld [vmem:[%s941 + $0x48] sm:$0xff]
        %v952 = vld [vmem:[%s941 + $0x50] sm:$0xff]
        %v953 = vld [vmem:[%s941 + $0x58] sm:$0xff]
        %v954 = vld [vmem:[%s941 + $0x60] sm:$0xff]
        %v955 = vld [vmem:[%s941 + $0x68] sm:$0xff]
        %v956 = vld [vmem:[%s941 + $0x70] sm:$0xff]
        %v957 = vld [vmem:[%s941 + $0x78] sm:$0xff]
        %958 = vmatprep.subr.mxu0 0.0
        %959 = vmatpush1.msra.mxu0 %v942
        %960 = vmatprep.subr.mxu0 0.0
        %961 = vmatpush1.msra.mxu0 %v943
        %962 = vmatprep.subr.mxu0 0.0
        %963 = vmatpush1.msra.mxu0 %v944
        %964 = vmatprep.subr.mxu0 0.0
        %965 = vmatpush1.msra.mxu0 %v945
        %966 = vmatprep.subr.mxu0 0.0
        %967 = vmatpush1.msra.mxu0 %v946
        %968 = vmatprep.subr.mxu0 0.0
        %969 = vmatpush1.msra.mxu0 %v947
        %970 = vmatprep.subr.mxu0 0.0
        %971 = vmatpush1.msra.mxu0 %v948
        %972 = vmatprep.subr.mxu0 0.0
        %973 = vmatpush1.msra.mxu0 %v949
        %974 = vmatprep.subr.mxu0 0.0
        %975 = vmatpush1.msra.mxu0 %v950
        %976 = vmatprep.subr.mxu0 0.0
        %977 = vmatpush1.msra.mxu0 %v951
        %978 = vmatprep.subr.mxu0 0.0
        %979 = vmatpush1.msra.mxu0 %v952
        %980 = vmatprep.subr.mxu0 0.0
        %981 = vmatpush1.msra.mxu0 %v953
        %982 = vmatprep.subr.mxu0 0.0
        %983 = vmatpush1.msra.mxu0 %v954
        %984 = vmatprep.subr.mxu0 0.0
        %985 = vmatpush1.msra.mxu0 %v955
        %986 = vmatprep.subr.mxu0 0.0
        %987 = vmatpush1.msra.mxu0 %v956
        %988 = vmatprep.subr.mxu0 0.0
        %989 = vmatpush1.msra.mxu0 %v957
        %990 = vmatprep.subr.mxu0 0.0
        %991 = vmatpush1.msra.mxu0 0.0
        %992 = vmatprep.subr.mxu0 0.0
        %993 = vmatpush1.msra.mxu0 0.0
        %994 = vmatprep.subr.mxu0 0.0
        %995 = vmatpush1.msra.mxu0 0.0
        %996 = vmatprep.subr.mxu0 0.0
        %997 = vmatpush1.msra.mxu0 0.0
        %998 = vmatprep.subr.mxu0 0.0
        %999 = vmatpush1.msra.mxu0 0.0
        %1000 = vmatprep.subr.mxu0 0.0
        %1001 = vmatpush1.msra.mxu0 0.0
        %1002 = vmatprep.subr.mxu0 0.0
        %1003 = vmatpush1.msra.mxu0 0.0
        %1004 = vmatprep.subr.mxu0 0.0
        %1005 = vmatpush1.msra.mxu0 0.0
        %1006 = vmatprep.subr.mxu0 0.0
        %1007 = vmatpush1.msra.mxu0 0.0
        %1008 = vmatprep.subr.mxu0 0.0
        %1009 = vmatpush1.msra.mxu0 0.0
        %1010 = vmatprep.subr.mxu0 0.0
        %1011 = vmatpush1.msra.mxu0 0.0
        %1012 = vmatprep.subr.mxu0 0.0
        %1013 = vmatpush1.msra.mxu0 0.0
        %1014 = vmatprep.subr.mxu0 0.0
        %1015 = vmatpush1.msra.mxu0 0.0
        %1016 = vmatprep.subr.mxu0 0.0
        %1017 = vmatpush1.msra.mxu0 0.0
        %1018 = vmatprep.subr.mxu0 0.0
        %1019 = vmatpush1.msra.mxu0 0.0
        %1020 = vmatprep.subr.mxu0 0.0
        %1021 = vmatpush1.msra.mxu0 0.0
        %1022 = vmatprep.mubr.f32.mxu0 0.0
        %1023 = vmatmul.mubr.f32.gmra.mrb[0].mxu0 %v932
        %v1024 = vpop.f32.mrb[0].mxu0
        %v1025 = vadd.f32 0.0, %v1024
        %v1026 = vpop.f32.mrb[0].mxu0
        %1027 = vmatprep.mubr.f32.mxu0 0.0
        %1028 = vmatmul.mubr.f32.gmra.mrb[0].mxu0 %v933
        %v1029 = vpop.f32.mrb[0].mxu0
        %v1030 = vadd.f32 0.0, %v1029
        %v1031 = vpop.f32.mrb[0].mxu0
        %1032 = vmatprep.mubr.f32.mxu0 0.0
        %1033 = vmatmul.mubr.f32.gmra.mrb[0].mxu0 %v934
        %v1034 = vpop.f32.mrb[0].mxu0
        %v1035 = vadd.f32 0.0, %v1034
        %v1036 = vpop.f32.mrb[0].mxu0
        %1037 = vmatprep.mubr.f32.mxu0 0.0
        %1038 = vmatmul.mubr.f32.gmra.mrb[0].mxu0 %v935
        %v1039 = vpop.f32.mrb[0].mxu0
        %v1040 = vadd.f32 0.0, %v1039
        %v1041 = vpop.f32.mrb[0].mxu0
        %1042 = vmatprep.mubr.f32.mxu0 0.0
        %1043 = vmatmul.mubr.f32.gmra.mrb[0].mxu0 %v936
        %v1044 = vpop.f32.mrb[0].mxu0
        %v1045 = vadd.f32 0.0, %v1044
        %v1046 = vpop.f32.mrb[0].mxu0
        %1047 = vmatprep.mubr.f32.mxu0 0.0
        %1048 = vmatmul.mubr.f32.gmra.mrb[0].mxu0 %v937
        %v1049 = vpop.f32.mrb[0].mxu0
        %v1050 = vadd.f32 0.0, %v1049
        %v1051 = vpop.f32.mrb[0].mxu0
        %1052 = vmatprep.mubr.f32.mxu0 0.0
        %1053 = vmatmul.mubr.f32.gmra.mrb[0].mxu0 %v938
        %v1054 = vpop.f32.mrb[0].mxu0
        %v1055 = vadd.f32 0.0, %v1054
        %v1056 = vpop.f32.mrb[0].mxu0
        %1057 = vmatprep.mubr.f32.mxu0 0.0
        %1058 = vmatmul.mubr.f32.gmra.mrb[0].mxu0 %v939
        %v1059 = vpop.f32.mrb[0].mxu0
        %v1060 = vadd.f32 0.0, %v1059
        %v1061 = vpop.f32.mrb[0].mxu0
        %1062 = vmatprep.mubr.f32.mxu0 0.0
        %1063 = vmatmul.mubr.f32.gmra.mrb[0].mxu0 %v940
        %v1064 = vpop.f32.mrb[0].mxu0
        %v1065 = vadd.f32 0.0, %v1064
        %v1066 = vpop.f32.mrb[0].mxu0
        %1067 = vdwg.mxu0
        %v1068 = vadd.f32 %v923, %v1025
        %v1069 = vadd.f32 %v924, %v1030
        %v1070 = vadd.f32 %v925, %v1035
        %v1071 = vadd.f32 %v926, %v1040
        %v1072 = vadd.f32 %v927, %v1045
        %v1073 = vadd.f32 %v928, %v1050
        %v1074 = vadd.f32 %v929, %v1055
        %v1075 = vadd.f32 %v930, %v1060
        %v1076 = vadd.f32 %v931, %v1065
        %v1077 = vld [vmem:[%s195 + $0x9] sm:$0xff]
        %v1078 = vld [vmem:[%s195 + $0x11] sm:$0xff]
        %v1079 = vld [vmem:[%s195 + $0x19] sm:$0xff]
        %v1080 = vld [vmem:[%s195 + $0x21] sm:$0xff]
        %v1081 = vld [vmem:[%s195 + $0x29] sm:$0xff]
        %v1082 = vld [vmem:[%s195 + $0x31] sm:$0xff]
        %v1083 = vld [vmem:[%s195 + $0x39] sm:$0xff]
        %v1084 = vld [vmem:[%s195 + $0x41] sm:$0xff]
        %v1085 = vld [vmem:[%s195 + $0x49] sm:$0xff]
        %s1086 = scalar_lea.vmem [#allocation5], 768
        %v1087 = vld [vmem:[%s1086] sm:$0xff]
        %v1088 = vld [vmem:[%s1086 + $0x8] sm:$0xff]
        %v1089 = vld [vmem:[%s1086 + $0x10] sm:$0xff]
        %v1090 = vld [vmem:[%s1086 + $0x18] sm:$0xff]
        %v1091 = vld [vmem:[%s1086 + $0x20] sm:$0xff]
        %v1092 = vld [vmem:[%s1086 + $0x28] sm:$0xff]
        %v1093 = vld [vmem:[%s1086 + $0x30] sm:$0xff]
        %v1094 = vld [vmem:[%s1086 + $0x38] sm:$0xff]
        %v1095 = vld [vmem:[%s1086 + $0x40] sm:$0xff]
        %v1096 = vld [vmem:[%s1086 + $0x48] sm:$0xff]
        %v1097 = vld [vmem:[%s1086 + $0x50] sm:$0xff]
        %v1098 = vld [vmem:[%s1086 + $0x58] sm:$0xff]
        %v1099 = vld [vmem:[%s1086 + $0x60] sm:$0xff]
        %v1100 = vld [vmem:[%s1086 + $0x68] sm:$0xff]
        %v1101 = vld [vmem:[%s1086 + $0x70] sm:$0xff]
        %v1102 = vld [vmem:[%s1086 + $0x78] sm:$0xff]
        %1103 = vmatprep.subr.mxu0 0.0
        %1104 = vmatpush1.msra.mxu0 %v1087
        %1105 = vmatprep.subr.mxu0 0.0
        %1106 = vmatpush1.msra.mxu0 %v1088
        %1107 = vmatprep.subr.mxu0 0.0
        %1108 = vmatpush1.msra.mxu0 %v1089
        %1109 = vmatprep.subr.mxu0 0.0
        %1110 = vmatpush1.msra.mxu0 %v1090
        %1111 = vmatprep.subr.mxu0 0.0
        %1112 = vmatpush1.msra.mxu0 %v1091
        %1113 = vmatprep.subr.mxu0 0.0
        %1114 = vmatpush1.msra.mxu0 %v1092
        %1115 = vmatprep.subr.mxu0 0.0
        %1116 = vmatpush1.msra.mxu0 %v1093
        %1117 = vmatprep.subr.mxu0 0.0
        %1118 = vmatpush1.msra.mxu0 %v1094
        %1119 = vmatprep.subr.mxu0 0.0
        %1120 = vmatpush1.msra.mxu0 %v1095
        %1121 = vmatprep.subr.mxu0 0.0
        %1122 = vmatpush1.msra.mxu0 %v1096
        %1123 = vmatprep.subr.mxu0 0.0
        %1124 = vmatpush1.msra.mxu0 %v1097
        %1125 = vmatprep.subr.mxu0 0.0
        %1126 = vmatpush1.msra.mxu0 %v1098
        %1127 = vmatprep.subr.mxu0 0.0
        %1128 = vmatpush1.msra.mxu0 %v1099
        %1129 = vmatprep.subr.mxu0 0.0
        %1130 = vmatpush1.msra.mxu0 %v1100
        %1131 = vmatprep.subr.mxu0 0.0
        %1132 = vmatpush1.msra.mxu0 %v1101
        %1133 = vmatprep.subr.mxu0 0.0
        %1134 = vmatpush1.msra.mxu0 %v1102
        %1135 = vmatprep.subr.mxu0 0.0
        %1136 = vmatpush1.msra.mxu0 0.0
        %1137 = vmatprep.subr.mxu0 0.0
        %1138 = vmatpush1.msra.mxu0 0.0
        %1139 = vmatprep.subr.mxu0 0.0
        %1140 = vmatpush1.msra.mxu0 0.0
        %1141 = vmatprep.subr.mxu0 0.0
        %1142 = vmatpush1.msra.mxu0 0.0
        %1143 = vmatprep.subr.mxu0 0.0
        %1144 = vmatpush1.msra.mxu0 0.0
        %1145 = vmatprep.subr.mxu0 0.0
        %1146 = vmatpush1.msra.mxu0 0.0
        %1147 = vmatprep.subr.mxu0 0.0
        %1148 = vmatpush1.msra.mxu0 0.0
        %1149 = vmatprep.subr.mxu0 0.0
        %1150 = vmatpush1.msra.mxu0 0.0
        %1151 = vmatprep.subr.mxu0 0.0
        %1152 = vmatpush1.msra.mxu0 0.0
        %1153 = vmatprep.subr.mxu0 0.0
        %1154 = vmatpush1.msra.mxu0 0.0
        %1155 = vmatprep.subr.mxu0 0.0
        %1156 = vmatpush1.msra.mxu0 0.0
        %1157 = vmatprep.subr.mxu0 0.0
        %1158 = vmatpush1.msra.mxu0 0.0
        %1159 = vmatprep.subr.mxu0 0.0
        %1160 = vmatpush1.msra.mxu0 0.0
        %1161 = vmatprep.subr.mxu0 0.0
        %1162 = vmatpush1.msra.mxu0 0.0
        %1163 = vmatprep.subr.mxu0 0.0
        %1164 = vmatpush1.msra.mxu0 0.0
        %1165 = vmatprep.subr.mxu0 0.0
        %1166 = vmatpush1.msra.mxu0 0.0
        %1167 = vmatprep.mubr.f32.mxu0 0.0
        %1168 = vmatmul.mubr.f32.gmra.mrb[0].mxu0 %v1077
        %v1169 = vpop.f32.mrb[0].mxu0
        %v1170 = vadd.f32 0.0, %v1169
        %v1171 = vpop.f32.mrb[0].mxu0
        %1172 = vmatprep.mubr.f32.mxu0 0.0
        %1173 = vmatmul.mubr.f32.gmra.mrb[0].mxu0 %v1078
        %v1174 = vpop.f32.mrb[0].mxu0
        %v1175 = vadd.f32 0.0, %v1174
        %v1176 = vpop.f32.mrb[0].mxu0
        %1177 = vmatprep.mubr.f32.mxu0 0.0
        %1178 = vmatmul.mubr.f32.gmra.mrb[0].mxu0 %v1079
        %v1179 = vpop.f32.mrb[0].mxu0
        %v1180 = vadd.f32 0.0, %v1179
        %v1181 = vpop.f32.mrb[0].mxu0
        %1182 = vmatprep.mubr.f32.mxu0 0.0
        %1183 = vmatmul.mubr.f32.gmra.mrb[0].mxu0 %v1080
        %v1184 = vpop.f32.mrb[0].mxu0
        %v1185 = vadd.f32 0.0, %v1184
        %v1186 = vpop.f32.mrb[0].mxu0
        %1187 = vmatprep.mubr.f32.mxu0 0.0
        %1188 = vmatmul.mubr.f32.gmra.mrb[0].mxu0 %v1081
        %v1189 = vpop.f32.mrb[0].mxu0
        %v1190 = vadd.f32 0.0, %v1189
        %v1191 = vpop.f32.mrb[0].mxu0
        %1192 = vmatprep.mubr.f32.mxu0 0.0
        %1193 = vmatmul.mubr.f32.gmra.mrb[0].mxu0 %v1082
        %v1194 = vpop.f32.mrb[0].mxu0
        %v1195 = vadd.f32 0.0, %v1194
        %v1196 = vpop.f32.mrb[0].mxu0
        %1197 = vmatprep.mubr.f32.mxu0 0.0
        %1198 = vmatmul.mubr.f32.gmra.mrb[0].mxu0 %v1083
        %v1199 = vpop.f32.mrb[0].mxu0
        %v1200 = vadd.f32 0.0, %v1199
        %v1201 = vpop.f32.mrb[0].mxu0
        %1202 = vmatprep.mubr.f32.mxu0 0.0
        %1203 = vmatmul.mubr.f32.gmra.mrb[0].mxu0 %v1084
        %v1204 = vpop.f32.mrb[0].mxu0
        %v1205 = vadd.f32 0.0, %v1204
        %v1206 = vpop.f32.mrb[0].mxu0
        %1207 = vmatprep.mubr.f32.mxu0 0.0
        %1208 = vmatmul.mubr.f32.gmra.mrb[0].mxu0 %v1085
        %v1209 = vpop.f32.mrb[0].mxu0
        %v1210 = vadd.f32 0.0, %v1209
        %v1211 = vpop.f32.mrb[0].mxu0
        %1212 = vdwg.mxu0
        %v1213 = vadd.f32 %v1068, %v1170
        %v1214 = vadd.f32 %v1069, %v1175
        %v1215 = vadd.f32 %v1070, %v1180
        %v1216 = vadd.f32 %v1071, %v1185
        %v1217 = vadd.f32 %v1072, %v1190
        %v1218 = vadd.f32 %v1073, %v1195
        %v1219 = vadd.f32 %v1074, %v1200
        %v1220 = vadd.f32 %v1075, %v1205
        %v1221 = vadd.f32 %v1076, %v1210
        %v1222 = vld [vmem:[%s248 + $0x9] sm:$0xff]
        %v1223 = vld [vmem:[%s248 + $0x11] sm:$0xff]
        %v1224 = vld [vmem:[%s248 + $0x19] sm:$0xff]
        %v1225 = vld [vmem:[%s248 + $0x21] sm:$0xff]
        %v1226 = vld [vmem:[%s248 + $0x29] sm:$0xff]
        %v1227 = vld [vmem:[%s248 + $0x31] sm:$0xff]
        %v1228 = vld [vmem:[%s248 + $0x39] sm:$0xff]
        %v1229 = vld [vmem:[%s248 + $0x41] sm:$0xff]
        %v1230 = vld [vmem:[%s248 + $0x49] sm:$0xff]
        %s1231 = scalar_lea.vmem [#allocation5], 896
        %v1232 = vld [vmem:[%s1231] sm:$0xff]
        %v1233 = vld [vmem:[%s1231 + $0x8] sm:$0xff]
        %v1234 = vld [vmem:[%s1231 + $0x10] sm:$0xff]
        %v1235 = vld [vmem:[%s1231 + $0x18] sm:$0xff]
        %v1236 = vld [vmem:[%s1231 + $0x20] sm:$0xff]
        %v1237 = vld [vmem:[%s1231 + $0x28] sm:$0xff]
        %v1238 = vld [vmem:[%s1231 + $0x30] sm:$0xff]
        %v1239 = vld [vmem:[%s1231 + $0x38] sm:$0xff]
        %v1240 = vld [vmem:[%s1231 + $0x40] sm:$0xff]
        %v1241 = vld [vmem:[%s1231 + $0x48] sm:$0xff]
        %v1242 = vld [vmem:[%s1231 + $0x50] sm:$0xff]
        %v1243 = vld [vmem:[%s1231 + $0x58] sm:$0xff]
        %v1244 = vld [vmem:[%s1231 + $0x60] sm:$0xff]
        %v1245 = vld [vmem:[%s1231 + $0x68] sm:$0xff]
        %v1246 = vld [vmem:[%s1231 + $0x70] sm:$0xff]
        %v1247 = vld [vmem:[%s1231 + $0x78] sm:$0xff]
        %1248 = vmatprep.subr.mxu0 0.0
        %1249 = vmatpush1.msra.mxu0 %v1232
        %1250 = vmatprep.subr.mxu0 0.0
        %1251 = vmatpush1.msra.mxu0 %v1233
        %1252 = vmatprep.subr.mxu0 0.0
        %1253 = vmatpush1.msra.mxu0 %v1234
        %1254 = vmatprep.subr.mxu0 0.0
        %1255 = vmatpush1.msra.mxu0 %v1235
        %1256 = vmatprep.subr.mxu0 0.0
        %1257 = vmatpush1.msra.mxu0 %v1236
        %1258 = vmatprep.subr.mxu0 0.0
        %1259 = vmatpush1.msra.mxu0 %v1237
        %1260 = vmatprep.subr.mxu0 0.0
        %1261 = vmatpush1.msra.mxu0 %v1238
        %1262 = vmatprep.subr.mxu0 0.0
        %1263 = vmatpush1.msra.mxu0 %v1239
        %1264 = vmatprep.subr.mxu0 0.0
        %1265 = vmatpush1.msra.mxu0 %v1240
        %1266 = vmatprep.subr.mxu0 0.0
        %1267 = vmatpush1.msra.mxu0 %v1241
        %1268 = vmatprep.subr.mxu0 0.0
        %1269 = vmatpush1.msra.mxu0 %v1242
        %1270 = vmatprep.subr.mxu0 0.0
        %1271 = vmatpush1.msra.mxu0 %v1243
        %1272 = vmatprep.subr.mxu0 0.0
        %1273 = vmatpush1.msra.mxu0 %v1244
        %1274 = vmatprep.subr.mxu0 0.0
        %1275 = vmatpush1.msra.mxu0 %v1245
        %1276 = vmatprep.subr.mxu0 0.0
        %1277 = vmatpush1.msra.mxu0 %v1246
        %1278 = vmatprep.subr.mxu0 0.0
        %1279 = vmatpush1.msra.mxu0 %v1247
        %1280 = vmatprep.subr.mxu0 0.0
        %1281 = vmatpush1.msra.mxu0 0.0
        %1282 = vmatprep.subr.mxu0 0.0
        %1283 = vmatpush1.msra.mxu0 0.0
        %1284 = vmatprep.subr.mxu0 0.0
        %1285 = vmatpush1.msra.mxu0 0.0
        %1286 = vmatprep.subr.mxu0 0.0
        %1287 = vmatpush1.msra.mxu0 0.0
        %1288 = vmatprep.subr.mxu0 0.0
        %1289 = vmatpush1.msra.mxu0 0.0
        %1290 = vmatprep.subr.mxu0 0.0
        %1291 = vmatpush1.msra.mxu0 0.0
        %1292 = vmatprep.subr.mxu0 0.0
        %1293 = vmatpush1.msra.mxu0 0.0
        %1294 = vmatprep.subr.mxu0 0.0
        %1295 = vmatpush1.msra.mxu0 0.0
        %1296 = vmatprep.subr.mxu0 0.0
        %1297 = vmatpush1.msra.mxu0 0.0
        %1298 = vmatprep.subr.mxu0 0.0
        %1299 = vmatpush1.msra.mxu0 0.0
        %1300 = vmatprep.subr.mxu0 0.0
        %1301 = vmatpush1.msra.mxu0 0.0
        %1302 = vmatprep.subr.mxu0 0.0
        %1303 = vmatpush1.msra.mxu0 0.0
        %1304 = vmatprep.subr.mxu0 0.0
        %1305 = vmatpush1.msra.mxu0 0.0
        %1306 = vmatprep.subr.mxu0 0.0
        %1307 = vmatpush1.msra.mxu0 0.0
        %1308 = vmatprep.subr.mxu0 0.0
        %1309 = vmatpush1.msra.mxu0 0.0
        %1310 = vmatprep.subr.mxu0 0.0
        %1311 = vmatpush1.msra.mxu0 0.0
        %1312 = vmatprep.mubr.f32.mxu0 0.0
        %1313 = vmatmul.mubr.f32.gmra.mrb[0].mxu0 %v1222
        %v1314 = vpop.f32.mrb[0].mxu0
        %v1315 = vadd.f32 0.0, %v1314
        %v1316 = vpop.f32.mrb[0].mxu0
        %1317 = vmatprep.mubr.f32.mxu0 0.0
        %1318 = vmatmul.mubr.f32.gmra.mrb[0].mxu0 %v1223
        %v1319 = vpop.f32.mrb[0].mxu0
        %v1320 = vadd.f32 0.0, %v1319
        %v1321 = vpop.f32.mrb[0].mxu0
        %1322 = vmatprep.mubr.f32.mxu0 0.0
        %1323 = vmatmul.mubr.f32.gmra.mrb[0].mxu0 %v1224
        %v1324 = vpop.f32.mrb[0].mxu0
        %v1325 = vadd.f32 0.0, %v1324
        %v1326 = vpop.f32.mrb[0].mxu0
        %1327 = vmatprep.mubr.f32.mxu0 0.0
        %1328 = vmatmul.mubr.f32.gmra.mrb[0].mxu0 %v1225
        %v1329 = vpop.f32.mrb[0].mxu0
        %v1330 = vadd.f32 0.0, %v1329
        %v1331 = vpop.f32.mrb[0].mxu0
        %1332 = vmatprep.mubr.f32.mxu0 0.0
        %1333 = vmatmul.mubr.f32.gmra.mrb[0].mxu0 %v1226
        %v1334 = vpop.f32.mrb[0].mxu0
        %v1335 = vadd.f32 0.0, %v1334
        %v1336 = vpop.f32.mrb[0].mxu0
        %1337 = vmatprep.mubr.f32.mxu0 0.0
        %1338 = vmatmul.mubr.f32.gmra.mrb[0].mxu0 %v1227
        %v1339 = vpop.f32.mrb[0].mxu0
        %v1340 = vadd.f32 0.0, %v1339
        %v1341 = vpop.f32.mrb[0].mxu0
        %1342 = vmatprep.mubr.f32.mxu0 0.0
        %1343 = vmatmul.mubr.f32.gmra.mrb[0].mxu0 %v1228
        %v1344 = vpop.f32.mrb[0].mxu0
        %v1345 = vadd.f32 0.0, %v1344
        %v1346 = vpop.f32.mrb[0].mxu0
        %1347 = vmatprep.mubr.f32.mxu0 0.0
        %1348 = vmatmul.mubr.f32.gmra.mrb[0].mxu0 %v1229
        %v1349 = vpop.f32.mrb[0].mxu0
        %v1350 = vadd.f32 0.0, %v1349
        %v1351 = vpop.f32.mrb[0].mxu0
        %1352 = vmatprep.mubr.f32.mxu0 0.0
        %1353 = vmatmul.mubr.f32.gmra.mrb[0].mxu0 %v1230
        %v1354 = vpop.f32.mrb[0].mxu0
        %v1355 = vadd.f32 0.0, %v1354
        %v1356 = vpop.f32.mrb[0].mxu0
        %1357 = vdwg.mxu0
        %v1358 = vadd.f32 %v1213, %v1315
        %v1359 = vadd.f32 %v1214, %v1320
        %v1360 = vadd.f32 %v1215, %v1325
        %v1361 = vadd.f32 %v1216, %v1330
        %v1362 = vadd.f32 %v1217, %v1335
        %v1363 = vadd.f32 %v1218, %v1340
        %v1364 = vadd.f32 %v1219, %v1345
        %v1365 = vadd.f32 %v1220, %v1350
        %v1366 = vadd.f32 %v1221, %v1355
        %v1367 = vld [vmem:[%s195 + $0xa] sm:$0xff]
        %v1368 = vld [vmem:[%s195 + $0x12] sm:$0xff]
        %v1369 = vld [vmem:[%s195 + $0x1a] sm:$0xff]
        %v1370 = vld [vmem:[%s195 + $0x22] sm:$0xff]
        %v1371 = vld [vmem:[%s195 + $0x2a] sm:$0xff]
        %v1372 = vld [vmem:[%s195 + $0x32] sm:$0xff]
        %v1373 = vld [vmem:[%s195 + $0x3a] sm:$0xff]
        %v1374 = vld [vmem:[%s195 + $0x42] sm:$0xff]
        %v1375 = vld [vmem:[%s195 + $0x4a] sm:$0xff]
        %s1376 = scalar_lea.vmem [#allocation5], 1024
        %v1377 = vld [vmem:[%s1376] sm:$0xff]
        %v1378 = vld [vmem:[%s1376 + $0x8] sm:$0xff]
        %v1379 = vld [vmem:[%s1376 + $0x10] sm:$0xff]
        %v1380 = vld [vmem:[%s1376 + $0x18] sm:$0xff]
        %v1381 = vld [vmem:[%s1376 + $0x20] sm:$0xff]
        %v1382 = vld [vmem:[%s1376 + $0x28] sm:$0xff]
        %v1383 = vld [vmem:[%s1376 + $0x30] sm:$0xff]
        %v1384 = vld [vmem:[%s1376 + $0x38] sm:$0xff]
        %v1385 = vld [vmem:[%s1376 + $0x40] sm:$0xff]
        %v1386 = vld [vmem:[%s1376 + $0x48] sm:$0xff]
        %v1387 = vld [vmem:[%s1376 + $0x50] sm:$0xff]
        %v1388 = vld [vmem:[%s1376 + $0x58] sm:$0xff]
        %v1389 = vld [vmem:[%s1376 + $0x60] sm:$0xff]
        %v1390 = vld [vmem:[%s1376 + $0x68] sm:$0xff]
        %v1391 = vld [vmem:[%s1376 + $0x70] sm:$0xff]
        %v1392 = vld [vmem:[%s1376 + $0x78] sm:$0xff]
        %1393 = vmatprep.subr.mxu0 0.0
        %1394 = vmatpush1.msra.mxu0 %v1377
        %1395 = vmatprep.subr.mxu0 0.0
        %1396 = vmatpush1.msra.mxu0 %v1378
        %1397 = vmatprep.subr.mxu0 0.0
        %1398 = vmatpush1.msra.mxu0 %v1379
        %1399 = vmatprep.subr.mxu0 0.0
        %1400 = vmatpush1.msra.mxu0 %v1380
        %1401 = vmatprep.subr.mxu0 0.0
        %1402 = vmatpush1.msra.mxu0 %v1381
        %1403 = vmatprep.subr.mxu0 0.0
        %1404 = vmatpush1.msra.mxu0 %v1382
        %1405 = vmatprep.subr.mxu0 0.0
        %1406 = vmatpush1.msra.mxu0 %v1383
        %1407 = vmatprep.subr.mxu0 0.0
        %1408 = vmatpush1.msra.mxu0 %v1384
        %1409 = vmatprep.subr.mxu0 0.0
        %1410 = vmatpush1.msra.mxu0 %v1385
        %1411 = vmatprep.subr.mxu0 0.0
        %1412 = vmatpush1.msra.mxu0 %v1386
        %1413 = vmatprep.subr.mxu0 0.0
        %1414 = vmatpush1.msra.mxu0 %v1387
        %1415 = vmatprep.subr.mxu0 0.0
        %1416 = vmatpush1.msra.mxu0 %v1388
        %1417 = vmatprep.subr.mxu0 0.0
        %1418 = vmatpush1.msra.mxu0 %v1389
        %1419 = vmatprep.subr.mxu0 0.0
        %1420 = vmatpush1.msra.mxu0 %v1390
        %1421 = vmatprep.subr.mxu0 0.0
        %1422 = vmatpush1.msra.mxu0 %v1391
        %1423 = vmatprep.subr.mxu0 0.0
        %1424 = vmatpush1.msra.mxu0 %v1392
        %1425 = vmatprep.subr.mxu0 0.0
        %1426 = vmatpush1.msra.mxu0 0.0
        %1427 = vmatprep.subr.mxu0 0.0
        %1428 = vmatpush1.msra.mxu0 0.0
        %1429 = vmatprep.subr.mxu0 0.0
        %1430 = vmatpush1.msra.mxu0 0.0
        %1431 = vmatprep.subr.mxu0 0.0
        %1432 = vmatpush1.msra.mxu0 0.0
        %1433 = vmatprep.subr.mxu0 0.0
        %1434 = vmatpush1.msra.mxu0 0.0
        %1435 = vmatprep.subr.mxu0 0.0
        %1436 = vmatpush1.msra.mxu0 0.0
        %1437 = vmatprep.subr.mxu0 0.0
        %1438 = vmatpush1.msra.mxu0 0.0
        %1439 = vmatprep.subr.mxu0 0.0
        %1440 = vmatpush1.msra.mxu0 0.0
        %1441 = vmatprep.subr.mxu0 0.0
        %1442 = vmatpush1.msra.mxu0 0.0
        %1443 = vmatprep.subr.mxu0 0.0
        %1444 = vmatpush1.msra.mxu0 0.0
        %1445 = vmatprep.subr.mxu0 0.0
        %1446 = vmatpush1.msra.mxu0 0.0
        %1447 = vmatprep.subr.mxu0 0.0
        %1448 = vmatpush1.msra.mxu0 0.0
        %1449 = vmatprep.subr.mxu0 0.0
        %1450 = vmatpush1.msra.mxu0 0.0
        %1451 = vmatprep.subr.mxu0 0.0
        %1452 = vmatpush1.msra.mxu0 0.0
        %1453 = vmatprep.subr.mxu0 0.0
        %1454 = vmatpush1.msra.mxu0 0.0
        %1455 = vmatprep.subr.mxu0 0.0
        %1456 = vmatpush1.msra.mxu0 0.0
        %1457 = vmatprep.mubr.f32.mxu0 0.0
        %1458 = vmatmul.mubr.f32.gmra.mrb[0].mxu0 %v1367
        %v1459 = vpop.f32.mrb[0].mxu0
        %v1460 = vadd.f32 0.0, %v1459
        %v1461 = vpop.f32.mrb[0].mxu0
        %1462 = vmatprep.mubr.f32.mxu0 0.0
        %1463 = vmatmul.mubr.f32.gmra.mrb[0].mxu0 %v1368
        %v1464 = vpop.f32.mrb[0].mxu0
        %v1465 = vadd.f32 0.0, %v1464
        %v1466 = vpop.f32.mrb[0].mxu0
        %1467 = vmatprep.mubr.f32.mxu0 0.0
        %1468 = vmatmul.mubr.f32.gmra.mrb[0].mxu0 %v1369
        %v1469 = vpop.f32.mrb[0].mxu0
        %v1470 = vadd.f32 0.0, %v1469
        %v1471 = vpop.f32.mrb[0].mxu0
        %1472 = vmatprep.mubr.f32.mxu0 0.0
        %1473 = vmatmul.mubr.f32.gmra.mrb[0].mxu0 %v1370
        %v1474 = vpop.f32.mrb[0].mxu0
        %v1475 = vadd.f32 0.0, %v1474
        %v1476 = vpop.f32.mrb[0].mxu0
        %1477 = vmatprep.mubr.f32.mxu0 0.0
        %1478 = vmatmul.mubr.f32.gmra.mrb[0].mxu0 %v1371
        %v1479 = vpop.f32.mrb[0].mxu0
        %v1480 = vadd.f32 0.0, %v1479
        %v1481 = vpop.f32.mrb[0].mxu0
        %1482 = vmatprep.mubr.f32.mxu0 0.0
        %1483 = vmatmul.mubr.f32.gmra.mrb[0].mxu0 %v1372
        %v1484 = vpop.f32.mrb[0].mxu0
        %v1485 = vadd.f32 0.0, %v1484
        %v1486 = vpop.f32.mrb[0].mxu0
        %1487 = vmatprep.mubr.f32.mxu0 0.0
        %1488 = vmatmul.mubr.f32.gmra.mrb[0].mxu0 %v1373
        %v1489 = vpop.f32.mrb[0].mxu0
        %v1490 = vadd.f32 0.0, %v1489
        %v1491 = vpop.f32.mrb[0].mxu0
        %1492 = vmatprep.mubr.f32.mxu0 0.0
        %1493 = vmatmul.mubr.f32.gmra.mrb[0].mxu0 %v1374
        %v1494 = vpop.f32.mrb[0].mxu0
        %v1495 = vadd.f32 0.0, %v1494
        %v1496 = vpop.f32.mrb[0].mxu0
        %1497 = vmatprep.mubr.f32.mxu0 0.0
        %1498 = vmatmul.mubr.f32.gmra.mrb[0].mxu0 %v1375
        %v1499 = vpop.f32.mrb[0].mxu0
        %v1500 = vadd.f32 0.0, %v1499
        %v1501 = vpop.f32.mrb[0].mxu0
        %1502 = vdwg.mxu0
        %v1503 = vadd.f32 %v1358, %v1460
        %v1504 = vadd.f32 %v1359, %v1465
        %v1505 = vadd.f32 %v1360, %v1470
        %v1506 = vadd.f32 %v1361, %v1475
        %v1507 = vadd.f32 %v1362, %v1480
        %v1508 = vadd.f32 %v1363, %v1485
        %v1509 = vadd.f32 %v1364, %v1490
        %v1510 = vadd.f32 %v1365, %v1495
        %v1511 = vadd.f32 %v1366, %v1500
        %v1512 = vld [vmem:[%s2] sm:$0x1]
        %v1514 = vlaneseq
        %v1515 = vshrl.u32 %v1514, 7
        %v1516 = vsub.s32 0, %v1515
        %v1517 = vrot.slane %v1512, %v1516
        %v1519 = vadd.f32 %v1503, %v1517
        %v1520 = vadd.f32 %v1504, %v1517
        %v1521 = vadd.f32 %v1505, %v1517
        %v1522 = vadd.f32 %v1506, %v1517
        %v1523 = vadd.f32 %v1507, %v1517
        %v1524 = vadd.f32 %v1508, %v1517
        %v1525 = vadd.f32 %v1509, %v1517
        %v1526 = vadd.f32 %v1510, %v1517
        %v1527 = vadd.f32 %v1511, %v1517
        %1528 = vst [vmem:[%s221] sm:$0xff] %v1519
        %1529 = vst [vmem:[%s221 + $0x8] sm:$0xff] %v1520
        %1530 = vst [vmem:[%s221 + $0x10] sm:$0xff] %v1521
        %1531 = vst [vmem:[%s221 + $0x18] sm:$0xff] %v1522
        %1532 = vst [vmem:[%s221 + $0x20] sm:$0xff] %v1523
        %1533 = vst [vmem:[%s221 + $0x28] sm:$0xff] %v1524
        %1534 = vst [vmem:[%s221 + $0x30] sm:$0xff] %v1525
        %1535 = vst [vmem:[%s221 + $0x38] sm:$0xff] %v1526
        %1536 = vst [vmem:[%s221 + $0x40] sm:$0xff] %v1527
        %s1537 = sand.u32 %s113, 1
        %s1538 = scalar_lea.sflag [#allocation4], %s1537
        %s1539 = sand.u32 %s113, 1
        %s1540 = smul.addr %s1539, 72
        %s1541 = scalar_lea.vmem [#allocation7], %s1540
        // Predicated region
        $region41: #{tpu_custom_call.1} parent=31 // pred_check
          %p1542 = pneg %p123
        $region42: #{tpu_custom_call.1} parent=31 // pred_check_branch
          %1544 = sbr.rel (%p1542) target = $region44
        $region43: #{tpu_custom_call.1} parent=31 // pred_region
          %s1545 = smul.u32 9, %s26
          %s1547 = ssub.s32 1152, 1152
          %1548 = vsyncadd %s1538, %s1547
          %s1549 = smul.addr %s25, 9
          %s1550 = sadd.s32 %s1545, %s1549
          %s1551 = smul.addr %s1550, 128
          %s1552 = scalar_lea.hbm %s3, %s1551
          %s1553 = sshll.u32 %s1541, 4
          %s1554 = int_to_ptr.vmem [resolvable:$true] %s1553
          %1559 = dma.vmem_to_hbm [thread:$0]  %s1554, 1152, %s1552, %s1538, 128, 128, 8
        $region44: #{tpu_custom_call.1} parent=31 // pred_fallthru
          _
      $region32: #{tpu_custom_call.1} parent=5 // pred_fallthru
        _
      %p1560 = scmp.le.s32.totalorder 2, %s16
      // Predicated region
      $region45: #{tpu_custom_call.1} parent=5 // pred_check
        %p1561 = pneg %p1560
      $region46: #{tpu_custom_call.1} parent=5 // pred_check_branch
        %1563 = sbr.rel (%p1561) target = $region48
      $region47: #{tpu_custom_call.1} parent=5 // pred_region
        %s1564 = ssub.s32 %s16, 2
        // Predicated region
        $region49: #{tpu_custom_call.1} parent=47 // pred_check
          %p1565 = pneg %p129
        $region50: #{tpu_custom_call.1} parent=47 // pred_check_branch
          %1567 = sbr.rel (%p1565) target = $region52
        $region51: #{tpu_custom_call.1} parent=47 // pred_region
          %s1568 = sand.u32 %s114, 1
          %s1569 = scalar_lea.sflag [#allocation4], %s1568
          %s1570 = sand.u32 %s114, 1
          %s1571 = smul.addr %s1570, 72
          %s1572 = scalar_lea.vmem [#allocation7], %s1571
          %1573 = dma.done %s1569, 1152
        $region52: #{tpu_custom_call.1} parent=47 // pred_fallthru
          _
      $region48: #{tpu_custom_call.1} parent=5 // pred_fallthru
        _
    $region6: #{tpu_custom_call.1} parent=1 // loop_footer
      %s20 = sadd.s32 1, %s16
    $region7: #{tpu_custom_call.1} parent=1 // loop_footer_branch
      %15 = sbr.rel target = $region3
    $region8: #{tpu_custom_call.1} parent=1 // loop_exit
      _
    %1574 = vsyncpa [#allocation3], 1
    %s1575 = scalar_lea.sflag [#allocation3], 1
    %1576 = vsyncpa %s1575, 1
    %1577 = vsyncpa [#allocation6], 1
    %1578 = vsyncpa [#allocation4], 1
    %s1579 = scalar_lea.sflag [#allocation4], 1
    %1580 = vsyncpa %s1579, 1

</llo_original>
